<compile_context>
chip_gen: v7x
topology: tpu7x:2x2x1
jax: 0.10.0
libtpu: 0.0.40
codegen_flags: <defaults>
</compile_context>

<pallas_src>
import math

import jax
import jax.numpy as jnp
from jax.experimental import pallas as pl
from jax.experimental.pallas import tpu as pltpu


_SQRT_HALF = 1.0 / math.sqrt(2.0)


def _gelu_exact(x):
    # torch.nn.GELU() default = exact erf-based GELU (kept for semantic parity;
    # switch to the tanh approximation only if profiling shows VALU-bound).
    return 0.5 * x * (1.0 + jax.lax.erf(x * _SQRT_HALF))


def _round_up(x, m):
    return ((x + m - 1) // m) * m


def _cdiv(a, b):
    return (a + b - 1) // b


# ----------------------------- Pallas kernel -------------------------------

def _afno_mlp_kernel(xr_ref, xi_ref,
                     w1r_ref, w1i_ref, b1_ref,
                     w2r_ref, w2i_ref, b2r_ref, b2i_ref,
                     or_ref, oi_ref):
    # xr/xi: (tm, Cp) bf16   -- real / imag parts of the kept Fourier modes.
    # w1r/w1i: (Cp, Hp) bf16 -- [W1r|W1i] and [-W1i|W1r]   (packed-complex, lane-padded)
    # w2r/w2i: (Hp, Cp) bf16 -- [[W2r],[-W2i]] and [[W2i],[W2r]]
    # b1: (1, Hp) f32, b2r/b2i: (1, Cp) f32.
    xr = xr_ref[...]
    xi = xi_ref[...]

    # First complex "block-MLP" layer, split over K so no in-kernel concat:
    #   z = [o1_real | o1_imag] = xr@[W1r|W1i] + xi@[-W1i|W1r] + [b1r|b1i]
    z = (jnp.dot(xr, w1r_ref[...], preferred_element_type=jnp.float32)
         + jnp.dot(xi, w1i_ref[...], preferred_element_type=jnp.float32)
         + b1_ref[...])
    h = _gelu_exact(z)                       # f32 GELU (exact erf)
    hb = h.astype(w2r_ref.dtype)             # back to bf16 for the MXU

    # Second layer, split over N into two lane-dense outputs (real / imag).
    or_ref[...] = (jnp.dot(hb, w2r_ref[...], preferred_element_type=jnp.float32)
                   + b2r_ref[...]).astype(or_ref.dtype)
    oi_ref[...] = (jnp.dot(hb, w2i_ref[...], preferred_element_type=jnp.float32)
                   + b2i_ref[...]).astype(oi_ref.dtype)


def _choose_tile_m(M, max_tile_m):
    # Guarantee >= 2 grid steps (v7x has 2 TensorCores; the row axis is
    # "parallel") whenever there is enough work, while keeping tm sublane
    # aligned and capped for v7x's 64 MiB VMEM.
    Mp8 = _round_up(max(M, 8), 8)
    tm = min(max_tile_m, max(8, _round_up(_cdiv(Mp8, 2), 8)))
    Mp = _round_up(M, tm)
    return tm, Mp


def _build_mlp_call(Mp, tm, Cp, Hp, *, single_buffer_weights):
    grid = (Mp // tm,)

    if single_buffer_weights:
        # Constant-index weights never change across the grid: single-buffer
        # them so double-buffering doesn't waste VMEM at large widths.
        def wspec(shape):
            return pl.BlockSpec(shape, lambda i: (0,) * len(shape),
                                pipeline_mode=pl.Buffered(1))
    else:
        def wspec(shape):
            return pl.BlockSpec(shape, lambda i: (0,) * len(shape))

    row_spec = pl.BlockSpec((tm, Cp), lambda i: (i, 0))

    # Advisory cost estimate so XLA schedules the surrounding FFTs sensibly.
    flops = 8 * Mp * Cp * Hp                       # 4 bf16 dots per row
    bytes_accessed = (2 * Mp * Cp * 2              # xr, xi (bf16)
                      + 4 * Cp * Hp * 2            # packed weights (bf16)
                      + (Hp + 2 * Cp) * 4          # biases (f32)
                      + 2 * Mp * Cp * 4)           # o2_real, o2_imag (f32)
    cost = pl.CostEstimate(flops=flops, transcendentals=Mp * Hp,
                           bytes_accessed=bytes_accessed)

    wbuf = 1 if single_buffer_weights else 2
    est = (2 * tm * Cp * 2 * 2                     # bf16 input tiles, 2 bufs
           + 2 * tm * Cp * 4 * 2                   # f32 output tiles, 2 bufs
           + (4 * Cp * Hp * 2 + (Hp + 2 * Cp) * 4) * wbuf   # resident weights
           + 3 * tm * Hp * 4)                      # z / gelu / bf16-h intermediates
    vmem_limit = int(min(64 * 1024 * 1024,
                         max(32 * 1024 * 1024, 2 * est + (4 << 20))))

    return pl.pallas_call(
        _afno_mlp_kernel,
        out_shape=(jax.ShapeDtypeStruct((Mp, Cp), jnp.float32),
                   jax.ShapeDtypeStruct((Mp, Cp), jnp.float32)),
        grid_spec=pltpu.PrefetchScalarGridSpec(
            num_scalar_prefetch=0,
            grid=grid,
            in_specs=[row_spec, row_spec,
                      wspec((Cp, Hp)), wspec((Cp, Hp)), wspec((1, Hp)),
                      wspec((Hp, Cp)), wspec((Hp, Cp)),
                      wspec((1, Cp)), wspec((1, Cp))],
            out_specs=(pl.BlockSpec((tm, Cp), lambda i: (i, 0)),
                       pl.BlockSpec((tm, Cp), lambda i: (i, 0))),
        ),
        compiler_params=pltpu.CompilerParams(
            dimension_semantics=("parallel",),
            vmem_limit_bytes=vmem_limit),
        cost_estimate=cost,
    )


def _afno_mlp_pallas(xr, xi, params, *, max_tile_m=256):
    """xr, xi: (M, Cp) bf16. Returns (o2_real, o2_imag), each (M, Cp) f32."""
    M, Cp = xr.shape
    Hp = params.Hp

    tm, Mp = _choose_tile_m(M, max_tile_m)
    if Mp != M:
        pad = ((0, Mp - M), (0, 0))
        xr = jnp.pad(xr, pad)
        xi = jnp.pad(xi, pad)
    # NOTE: padded rows produce bias-driven nonzero outputs; they are sliced
    # off below and must stay sliced off if this code is ever restructured.

    args = (xr, xi,
            params.w1_from_r, params.w1_from_i, params.b1p,
            params.w2_to_r, params.w2_to_i, params.b2r_p, params.b2i_p)

    try:
        o2r, o2i = _build_mlp_call(Mp, tm, Cp, Hp, single_buffer_weights=True)(*args)
    except Exception:
        # pipeline_mode=pl.Buffered(1) not supported on this jax build; fall
        # back to default (double) buffering of the resident weights.
        o2r, o2i = _build_mlp_call(Mp, tm, Cp, Hp, single_buffer_weights=False)(*args)

    if Mp != M:
        o2r = o2r[:M]
        o2i = o2i[:M]
    return o2r, o2i


# ------------------------ weight packing helpers ----------------------------

def _block_diag(w):
    """(nb, r, c) block weights -> dense (nb*r, nb*c) block-diagonal matrix."""
    nb, r, c = w.shape
    eye = jnp.eye(nb, dtype=w.dtype)
    d = w[:, :, None, :] * eye[:, None, :, None]        # (nb, r, nb, c)
    return d.reshape(nb * r, nb * c)


def _pad2(a, rows, cols):
    return jnp.pad(a, ((0, rows - a.shape[0]), (0, cols - a.shape[1])))


# ------------------------------- AFNO2D -------------------------------------

class AFNO2DParams:
    def __init__(self, key, width=32, num_blocks=8, sparsity_threshold=0.01,
                 modes=32, hidden_size_factor=1):
        assert width % num_blocks == 0
        self.hidden_size = width
        self.num_blocks = num_blocks
        self.block_size = width // num_blocks
        self.modes = modes
        self.hidden_size_factor = hidden_size_factor
        self.scale = 1.0 / (self.block_size * self.block_size * hidden_size_factor)
        # sparsity_threshold is stored (like the PyTorch module) but unused in forward.
        self.sparsity_threshold = sparsity_threshold

        bs, hs = self.block_size, self.block_size * hidden_size_factor
        k1, k2, k3, k4 = jax.random.split(key, 4)
        # torch.rand -> uniform [0, 1)
        self.w1 = self.scale * jax.random.uniform(k1, (2, num_blocks, bs, hs), jnp.float32)
        self.b1 = self.scale * jax.random.uniform(k2, (2, num_blocks, hs), jnp.float32)
        self.w2 = self.scale * jax.random.uniform(k3, (2, num_blocks, hs, bs), jnp.float32)
        self.b2 = self.scale * jax.random.uniform(k4, (2, num_blocks, bs), jnp.float32)

        C = width
        Hh = C * hidden_size_factor                       # total hidden channels
        self.Cp = _round_up(C, 128)                       # lane-padded channels
        self.Hp = _round_up(2 * Hh, 128)                  # lane-padded [real|imag] hidden

        # TODO(synk): for large widths (2*width > ~256) the dense block-diagonal
        # fold below wastes num_blocks x FLOPs/VMEM; use a block-batched
        # (nb, tm, 2*bs) x (nb, 2*bs, 2*hs) kernel instead of densifying.
        W1r = _block_diag(self.w1[0])                     # (C, Hh)
        W1i = _block_diag(self.w1[1])
        W2r = _block_diag(self.w2[0])                     # (Hh, C)
        W2i = _block_diag(self.w2[1])
        b1r = self.b1[0].reshape(-1)                      # (Hh,)
        b1i = self.b1[1].reshape(-1)
        b2r = self.b2[0].reshape(-1)                      # (C,)
        b2i = self.b2[1].reshape(-1)

        # First layer:  [o1r|o1i] = xr @ [W1r|W1i] + xi @ [-W1i|W1r] + [b1r|b1i]
        w1_from_r = jnp.concatenate([W1r, W1i], axis=1)   # (C, 2Hh)
        w1_from_i = jnp.concatenate([-W1i, W1r], axis=1)  # (C, 2Hh)
        b1p = jnp.concatenate([b1r, b1i])                 # (2Hh,)
        # Second layer: o2r = [o1r|o1i] @ [[W2r],[-W2i]] + b2r
        #               o2i = [o1r|o1i] @ [[W2i],[ W2r]] + b2i
        w2_to_r = jnp.concatenate([W2r, -W2i], axis=0)    # (2Hh, C)
        w2_to_i = jnp.concatenate([W2i, W2r], axis=0)     # (2Hh, C)

        # Lane-pad to multiples of 128 and cast to bf16 (full-rate MXU path,
        # half the resident-weight VMEM). Biases stay f32 (added post-dot).
        self.w1_from_r = _pad2(w1_from_r, self.Cp, self.Hp).astype(jnp.bfloat16)
        self.w1_from_i = _pad2(w1_from_i, self.Cp, self.Hp).astype(jnp.bfloat16)
        self.w2_to_r = _pad2(w2_to_r, self.Hp, self.Cp).astype(jnp.bfloat16)
        self.w2_to_i = _pad2(w2_to_i, self.Hp, self.Cp).astype(jnp.bfloat16)
        self.b1p = jnp.pad(b1p, (0, self.Hp - 2 * Hh)).reshape(1, self.Hp).astype(jnp.float32)
        self.b2r_p = jnp.pad(b2r, (0, self.Cp - C)).reshape(1, self.Cp).astype(jnp.float32)
        self.b2i_p = jnp.pad(b2i, (0, self.Cp - C)).reshape(1, self.Cp).astype(jnp.float32)


def afno2d_forward(params: AFNO2DParams, x):
    """x: (B, H, W, C) float32, channels-last (channel_first=False)."""
    B, H, W, C = x.shape
    x_orig = x

    xf = jnp.fft.rfft2(x, axes=(1, 2), norm="ortho")          # (B, H, Wf, C) complex64
    Wf = xf.shape[2]

    kh = min(params.modes, H)
    kw = min(params.modes, Wf)
    xk = xf[:, :kh, :kw, :]                                    # kept modes

    M = B * kh * kw
    Cp = params.Cp
    xr = jnp.real(xk).astype(jnp.float32).reshape(M, C)
    xi = jnp.imag(xk).astype(jnp.float32).reshape(M, C)
    # Lane-pad channels to a multiple of 128 and cast to bf16 (halves DMA bytes).
    xr = jnp.pad(xr, ((0, 0), (0, Cp - C))).astype(jnp.bfloat16)
    xi = jnp.pad(xi, ((0, 0), (0, Cp - C))).astype(jnp.bfloat16)

    o2r_p, o2i_p = _afno_mlp_pallas(xr, xi, params)

    o2r = o2r_p[:, :C].reshape(B, kh, kw, C)
    o2i = o2i_p[:, :C].reshape(B, kh, kw, C)
    o2 = jax.lax.complex(o2r, o2i)                             # (B, kh, kw, C)

    # Zero-pad back to the full spectrum (no zeros + scatter).
    full = jnp.pad(o2, ((0, 0), (0, H - kh), (0, Wf - kw), (0, 0)))

    y = jnp.fft.irfft2(full, s=(H, W), axes=(1, 2), norm="ortho")
    return y + x_orig


# ------------------------------- reference ----------------------------------

def afno2d_reference(params: AFNO2DParams, x):
    """Pure-JAX f32 reference mirroring the PyTorch forward."""
    B, H, W, C = x.shape
    nb, bs = params.num_blocks, params.block_size
    x_orig = x
    xf = jnp.fft.rfft2(x, axes=(1, 2), norm="ortho")
    Wf = xf.shape[2]
    xf = xf.reshape(B, H, Wf, nb, bs)
    kh, kw = min(params.modes, H), min(params.modes, Wf)

    xr = jnp.real(xf[:, :kh, :kw]).astype(jnp.float32)
    xi = jnp.imag(xf[:, :kh, :kw]).astype(jnp.float32)
    ein = lambda a, w: jnp.einsum("...bi,bio->...bo", a, w)
    gelu = lambda z: 0.5 * z * (1.0 + jax.lax.erf(z / jnp.sqrt(2.0)))

    o1r = gelu(ein(xr, params.w1[0]) - ein(xi, params.w1[1]) + params.b1[0])
    o1i = gelu(ein(xi, params.w1[0]) + ein(xr, params.w1[1]) + params.b1[1])
    o2r = ein(o1r, params.w2[0]) - ein(o1i, params.w2[1]) + params.b2[0]
    o2i = ein(o1i, params.w2[0]) + ein(o1r, params.w2[1]) + params.b2[1]

    full = jnp.zeros((B, H, Wf, nb, bs), dtype=jnp.complex64)
    full = full.at[:, :kh, :kw].set(o2r + 1j * o2i)
    full = full.reshape(B, H, Wf, C)
    y = jnp.fft.irfft2(full, s=(H, W), axes=(1, 2), norm="ortho")
    return y + x_orig


# --------------------------------- main --------------------------------------

if __name__ == "__main__":
    key = jax.random.PRNGKey(0)
    kp, kx = jax.random.split(key)

    # small shapes: B=2, H=W=16, C=width=32, num_blocks=8 -> block_size=4, modes=8
    params = AFNO2DParams(kp, width=32, num_blocks=8, modes=8, hidden_size_factor=1)
    x = jax.random.normal(kx, (2, 16, 16, 32), dtype=jnp.float32)

    out = jax.block_until_ready(afno2d_forward(params, x))
    ref = jax.block_until_ready(afno2d_reference(params, x))

    assert out.shape == x.shape
    # bf16 MXU operands (per perf review) -> compare against the f32 reference
    # with a bf16-appropriate tolerance.
    max_err = float(jnp.max(jnp.abs(out - ref)))
    assert jnp.allclose(out, ref, atol=3e-3, rtol=3e-3), (
        f"mismatch vs reference, max abs err = {max_err}")

    print("KERNEL_OK")
</pallas_src>

<mosaic_0001>
module attributes {stable_mosaic.version = 11 : i64} {
  func.func @_afno_mlp_kernel(%arg0: i32, %arg1: memref<64x128xbf16, #tpu.memory_space<vmem>>, %arg2: memref<64x128xbf16, #tpu.memory_space<vmem>>, %arg3: memref<128x128xbf16, #tpu.memory_space<vmem>>, %arg4: memref<128x128xbf16, #tpu.memory_space<vmem>>, %arg5: memref<1x128xf32, #tpu.memory_space<vmem>>, %arg6: memref<128x128xbf16, #tpu.memory_space<vmem>>, %arg7: memref<128x128xbf16, #tpu.memory_space<vmem>>, %arg8: memref<1x128xf32, #tpu.memory_space<vmem>>, %arg9: memref<1x128xf32, #tpu.memory_space<vmem>>, %arg10: memref<64x128xf32, #tpu.memory_space<vmem>>, %arg11: memref<64x128xf32, #tpu.memory_space<vmem>>) attributes {dimension_semantics = [#tpu.dimension_semantics<parallel>], iteration_bounds = array<i64: 2>, scalar_prefetch = 0 : i64, scratch_operands = 0 : i64, tpu.core_type = #tpu.core_type<tc>, window_params = [{transform_indices = @transform_0, window_bounds = array<i64: 64, 128>}, {transform_indices = @transform_1, window_bounds = array<i64: 64, 128>}, {pipeline_mode = #tpu.pipeline_mode<synchronous>, transform_indices = @transform_2, window_bounds = array<i64: 128, 128>}, {pipeline_mode = #tpu.pipeline_mode<synchronous>, transform_indices = @transform_3, window_bounds = array<i64: 128, 128>}, {pipeline_mode = #tpu.pipeline_mode<synchronous>, transform_indices = @transform_4, window_bounds = array<i64: 1, 128>}, {pipeline_mode = #tpu.pipeline_mode<synchronous>, transform_indices = @transform_5, window_bounds = array<i64: 128, 128>}, {pipeline_mode = #tpu.pipeline_mode<synchronous>, transform_indices = @transform_6, window_bounds = array<i64: 128, 128>}, {pipeline_mode = #tpu.pipeline_mode<synchronous>, transform_indices = @transform_7, window_bounds = array<i64: 1, 128>}, {pipeline_mode = #tpu.pipeline_mode<synchronous>, transform_indices = @transform_8, window_bounds = array<i64: 1, 128>}, {transform_indices = @transform_9, window_bounds = array<i64: 64, 128>}, {transform_indices = @transform_10, window_bounds = array<i64: 64, 128>}]} {
    %c0 = arith.constant 0 : index
    %c0_0 = arith.constant 0 : index
    %0 = vector.load %arg1[%c0, %c0_0] : memref<64x128xbf16, #tpu.memory_space<vmem>>, vector<64x128xbf16>
    %c0_1 = arith.constant 0 : index
    %c0_2 = arith.constant 0 : index
    %1 = vector.load %arg2[%c0_1, %c0_2] : memref<64x128xbf16, #tpu.memory_space<vmem>>, vector<64x128xbf16>
    %c0_3 = arith.constant 0 : index
    %c0_4 = arith.constant 0 : index
    %2 = vector.load %arg3[%c0_3, %c0_4] : memref<128x128xbf16, #tpu.memory_space<vmem>>, vector<128x128xbf16>
    %cst = arith.constant dense<0.000000e+00> : vector<64x128xf32>
    %3 = tpu.matmul %0, %2, %cst {dimension_numbers = #tpu.dot_dimension_numbers<[1], [0], [0], [1], [0, 0, 1, 1], [], []>} : vector<64x128xbf16>, vector<128x128xbf16>, vector<64x128xf32> -> vector<64x128xf32>
    %c0_5 = arith.constant 0 : index
    %c0_6 = arith.constant 0 : index
    %4 = vector.load %arg4[%c0_5, %c0_6] : memref<128x128xbf16, #tpu.memory_space<vmem>>, vector<128x128xbf16>
    %cst_7 = arith.constant dense<0.000000e+00> : vector<64x128xf32>
    %5 = tpu.matmul %1, %4, %cst_7 {dimension_numbers = #tpu.dot_dimension_numbers<[1], [0], [0], [1], [0, 0, 1, 1], [], []>} : vector<64x128xbf16>, vector<128x128xbf16>, vector<64x128xf32> -> vector<64x128xf32>
    %6 = arith.addf %3, %5 : vector<64x128xf32>
    %c0_8 = arith.constant 0 : index
    %c0_9 = arith.constant 0 : index
    %7 = vector.load %arg5[%c0_8, %c0_9] : memref<1x128xf32, #tpu.memory_space<vmem>>, vector<1x128xf32>
    %8 = vector.broadcast %7 : vector<1x128xf32> to vector<64x128xf32>
    %9 = arith.addf %6, %8 : vector<64x128xf32>
    %cst_10 = arith.constant 5.000000e-01 : f32
    %10 = vector.broadcast %cst_10 : f32 to vector<64x128xf32>
    %11 = arith.mulf %10, %9 : vector<64x128xf32>
    %cst_11 = arith.constant 0.707106769 : f32
    %12 = vector.broadcast %cst_11 : f32 to vector<64x128xf32>
    %13 = arith.mulf %9, %12 : vector<64x128xf32>
    %14 = math.erf %13 : vector<64x128xf32>
    %cst_12 = arith.constant 1.000000e+00 : f32
    %15 = vector.broadcast %cst_12 : f32 to vector<64x128xf32>
    %16 = arith.addf %15, %14 : vector<64x128xf32>
    %17 = arith.mulf %11, %16 : vector<64x128xf32>
    %18 = arith.truncf %17 : vector<64x128xf32> to vector<64x128xbf16>
    %c0_13 = arith.constant 0 : index
    %c0_14 = arith.constant 0 : index
    %19 = vector.load %arg6[%c0_13, %c0_14] : memref<128x128xbf16, #tpu.memory_space<vmem>>, vector<128x128xbf16>
    %cst_15 = arith.constant dense<0.000000e+00> : vector<64x128xf32>
    %20 = tpu.matmul %18, %19, %cst_15 {dimension_numbers = #tpu.dot_dimension_numbers<[1], [0], [0], [1], [0, 0, 1, 1], [], []>} : vector<64x128xbf16>, vector<128x128xbf16>, vector<64x128xf32> -> vector<64x128xf32>
    %c0_16 = arith.constant 0 : index
    %c0_17 = arith.constant 0 : index
    %21 = vector.load %arg8[%c0_16, %c0_17] : memref<1x128xf32, #tpu.memory_space<vmem>>, vector<1x128xf32>
    %22 = vector.broadcast %21 : vector<1x128xf32> to vector<64x128xf32>
    %23 = arith.addf %20, %22 : vector<64x128xf32>
    %c0_18 = arith.constant 0 : index
    %c0_19 = arith.constant 0 : index
    %24 = vector.load %arg10[%c0_18, %c0_19] : memref<64x128xf32, #tpu.memory_space<vmem>>, vector<64x128xf32>
    tpu.vector_store %arg10[%c0_18, %c0_19], %23 {strides = array<i32>} : memref<64x128xf32, #tpu.memory_space<vmem>>, vector<64x128xf32>,
    %c0_20 = arith.constant 0 : index
    %c0_21 = arith.constant 0 : index
    %25 = vector.load %arg7[%c0_20, %c0_21] : memref<128x128xbf16, #tpu.memory_space<vmem>>, vector<128x128xbf16>
    %cst_22 = arith.constant dense<0.000000e+00> : vector<64x128xf32>
    %26 = tpu.matmul %18, %25, %cst_22 {dimension_numbers = #tpu.dot_dimension_numbers<[1], [0], [0], [1], [0, 0, 1, 1], [], []>} : vector<64x128xbf16>, vector<128x128xbf16>, vector<64x128xf32> -> vector<64x128xf32>
    %c0_23 = arith.constant 0 : index
    %c0_24 = arith.constant 0 : index
    %27 = vector.load %arg9[%c0_23, %c0_24] : memref<1x128xf32, #tpu.memory_space<vmem>>, vector<1x128xf32>
    %28 = vector.broadcast %27 : vector<1x128xf32> to vector<64x128xf32>
    %29 = arith.addf %26, %28 : vector<64x128xf32>
    %c0_25 = arith.constant 0 : index
    %c0_26 = arith.constant 0 : index
    %30 = vector.load %arg11[%c0_25, %c0_26] : memref<64x128xf32, #tpu.memory_space<vmem>>, vector<64x128xf32>
    tpu.vector_store %arg11[%c0_25, %c0_26], %29 {strides = array<i32>} : memref<64x128xf32, #tpu.memory_space<vmem>>, vector<64x128xf32>,
    return
  }
  func.func @transform_0(%arg0: i32) -> (i32, i32) {
    %c0_i32 = arith.constant 0 : i32
    %c0_i32_0 = arith.constant 0 : i32
    return %arg0, %c0_i32 : i32, i32
  }
  func.func @transform_1(%arg0: i32) -> (i32, i32) {
    %c0_i32 = arith.constant 0 : i32
    %c0_i32_0 = arith.constant 0 : i32
    return %arg0, %c0_i32 : i32, i32
  }
  func.func @transform_2(%arg0: i32) -> (i32, i32) {
    %c0_i32 = arith.constant 0 : i32
    %c0_i32_0 = arith.constant 0 : i32
    %c0_i32_1 = arith.constant 0 : i32
    return %c0_i32, %c0_i32_0 : i32, i32
  }
  func.func @transform_3(%arg0: i32) -> (i32, i32) {
    %c0_i32 = arith.constant 0 : i32
    %c0_i32_0 = arith.constant 0 : i32
    %c0_i32_1 = arith.constant 0 : i32
    return %c0_i32, %c0_i32_0 : i32, i32
  }
  func.func @transform_4(%arg0: i32) -> (i32, i32) {
    %c0_i32 = arith.constant 0 : i32
    %c0_i32_0 = arith.constant 0 : i32
    %c0_i32_1 = arith.constant 0 : i32
    return %c0_i32, %c0_i32_0 : i32, i32
  }
  func.func @transform_5(%arg0: i32) -> (i32, i32) {
    %c0_i32 = arith.constant 0 : i32
    %c0_i32_0 = arith.constant 0 : i32
    %c0_i32_1 = arith.constant 0 : i32
    return %c0_i32, %c0_i32_0 : i32, i32
  }
  func.func @transform_6(%arg0: i32) -> (i32, i32) {
    %c0_i32 = arith.constant 0 : i32
    %c0_i32_0 = arith.constant 0 : i32
    %c0_i32_1 = arith.constant 0 : i32
    return %c0_i32, %c0_i32_0 : i32, i32
  }
  func.func @transform_7(%arg0: i32) -> (i32, i32) {
    %c0_i32 = arith.constant 0 : i32
    %c0_i32_0 = arith.constant 0 : i32
    %c0_i32_1 = arith.constant 0 : i32
    return %c0_i32, %c0_i32_0 : i32, i32
  }
  func.func @transform_8(%arg0: i32) -> (i32, i32) {
    %c0_i32 = arith.constant 0 : i32
    %c0_i32_0 = arith.constant 0 : i32
    %c0_i32_1 = arith.constant 0 : i32
    return %c0_i32, %c0_i32_0 : i32, i32
  }
  func.func @transform_9(%arg0: i32) -> (i32, i32) {
    %c0_i32 = arith.constant 0 : i32
    %c0_i32_0 = arith.constant 0 : i32
    return %arg0, %c0_i32 : i32, i32
  }
  func.func @transform_10(%arg0: i32) -> (i32, i32) {
    %c0_i32 = arith.constant 0 : i32
    %c0_i32_0 = arith.constant 0 : i32
    return %arg0, %c0_i32 : i32, i32
  }
}

module attributes {stable_mosaic.version = 11 : i64} {
  func.func @_afno_mlp_kernel(%arg0: i32, %arg1: memref<64x128xbf16, #tpu.memory_space<vmem>>, %arg2: memref<64x128xbf16, #tpu.memory_space<vmem>>, %arg3: memref<128x128xbf16, #tpu.memory_space<vmem>>, %arg4: memref<128x128xbf16, #tpu.memory_space<vmem>>, %arg5: memref<1x128xf32, #tpu.memory_space<vmem>>, %arg6: memref<128x128xbf16, #tpu.memory_space<vmem>>, %arg7: memref<128x128xbf16, #tpu.memory_space<vmem>>, %arg8: memref<1x128xf32, #tpu.memory_space<vmem>>, %arg9: memref<1x128xf32, #tpu.memory_space<vmem>>, %arg10: memref<64x128xf32, #tpu.memory_space<vmem>>, %arg11: memref<64x128xf32, #tpu.memory_space<vmem>>) attributes {dimension_semantics = [#tpu.dimension_semantics<parallel>], iteration_bounds = array<i64: 2>, scalar_prefetch = 0 : i64, scratch_operands = 0 : i64, tpu.core_type = #tpu.core_type<tc>, window_params = [{transform_indices = @transform_0, window_bounds = array<i64: 64, 128>}, {transform_indices = @transform_1, window_bounds = array<i64: 64, 128>}, {pipeline_mode = #tpu.pipeline_mode<synchronous>, transform_indices = @transform_2, window_bounds = array<i64: 128, 128>}, {pipeline_mode = #tpu.pipeline_mode<synchronous>, transform_indices = @transform_3, window_bounds = array<i64: 128, 128>}, {pipeline_mode = #tpu.pipeline_mode<synchronous>, transform_indices = @transform_4, window_bounds = array<i64: 1, 128>}, {pipeline_mode = #tpu.pipeline_mode<synchronous>, transform_indices = @transform_5, window_bounds = array<i64: 128, 128>}, {pipeline_mode = #tpu.pipeline_mode<synchronous>, transform_indices = @transform_6, window_bounds = array<i64: 128, 128>}, {pipeline_mode = #tpu.pipeline_mode<synchronous>, transform_indices = @transform_7, window_bounds = array<i64: 1, 128>}, {pipeline_mode = #tpu.pipeline_mode<synchronous>, transform_indices = @transform_8, window_bounds = array<i64: 1, 128>}, {transform_indices = @transform_9, window_bounds = array<i64: 64, 128>}, {transform_indices = @transform_10, window_bounds = array<i64: 64, 128>}]} {
    %c0 = arith.constant 0 : index
    %c0_0 = arith.constant 0 : index
    %0 = vector.load %arg1[%c0, %c0_0] : memref<64x128xbf16, #tpu.memory_space<vmem>>, vector<64x128xbf16>
    %c0_1 = arith.constant 0 : index
    %c0_2 = arith.constant 0 : index
    %1 = vector.load %arg2[%c0_1, %c0_2] : memref<64x128xbf16, #tpu.memory_space<vmem>>, vector<64x128xbf16>
    %c0_3 = arith.constant 0 : index
    %c0_4 = arith.constant 0 : index
    %2 = vector.load %arg3[%c0_3, %c0_4] : memref<128x128xbf16, #tpu.memory_space<vmem>>, vector<128x128xbf16>
    %cst = arith.constant dense<0.000000e+00> : vector<64x128xf32>
    %3 = tpu.matmul %0, %2, %cst {dimension_numbers = #tpu.dot_dimension_numbers<[1], [0], [0], [1], [0, 0, 1, 1], [], []>} : vector<64x128xbf16>, vector<128x128xbf16>, vector<64x128xf32> -> vector<64x128xf32>
    %c0_5 = arith.constant 0 : index
    %c0_6 = arith.constant 0 : index
    %4 = vector.load %arg4[%c0_5, %c0_6] : memref<128x128xbf16, #tpu.memory_space<vmem>>, vector<128x128xbf16>
    %cst_7 = arith.constant dense<0.000000e+00> : vector<64x128xf32>
    %5 = tpu.matmul %1, %4, %cst_7 {dimension_numbers = #tpu.dot_dimension_numbers<[1], [0], [0], [1], [0, 0, 1, 1], [], []>} : vector<64x128xbf16>, vector<128x128xbf16>, vector<64x128xf32> -> vector<64x128xf32>
    %6 = arith.addf %3, %5 : vector<64x128xf32>
    %c0_8 = arith.constant 0 : index
    %c0_9 = arith.constant 0 : index
    %7 = vector.load %arg5[%c0_8, %c0_9] : memref<1x128xf32, #tpu.memory_space<vmem>>, vector<1x128xf32>
    %8 = vector.broadcast %7 : vector<1x128xf32> to vector<64x128xf32>
    %9 = arith.addf %6, %8 : vector<64x128xf32>
    %cst_10 = arith.constant 5.000000e-01 : f32
    %10 = vector.broadcast %cst_10 : f32 to vector<64x128xf32>
    %11 = arith.mulf %10, %9 : vector<64x128xf32>
    %cst_11 = arith.constant 0.707106769 : f32
    %12 = vector.broadcast %cst_11 : f32 to vector<64x128xf32>
    %13 = arith.mulf %9, %12 : vector<64x128xf32>
    %14 = math.erf %13 : vector<64x128xf32>
    %cst_12 = arith.constant 1.000000e+00 : f32
    %15 = vector.broadcast %cst_12 : f32 to vector<64x128xf32>
    %16 = arith.addf %15, %14 : vector<64x128xf32>
    %17 = arith.mulf %11, %16 : vector<64x128xf32>
    %18 = arith.truncf %17 : vector<64x128xf32> to vector<64x128xbf16>
    %c0_13 = arith.constant 0 : index
    %c0_14 = arith.constant 0 : index
    %19 = vector.load %arg6[%c0_13, %c0_14] : memref<128x128xbf16, #tpu.memory_space<vmem>>, vector<128x128xbf16>
    %cst_15 = arith.constant dense<0.000000e+00> : vector<64x128xf32>
    %20 = tpu.matmul %18, %19, %cst_15 {dimension_numbers = #tpu.dot_dimension_numbers<[1], [0], [0], [1], [0, 0, 1, 1], [], []>} : vector<64x128xbf16>, vector<128x128xbf16>, vector<64x128xf32> -> vector<64x128xf32>
    %c0_16 = arith.constant 0 : index
    %c0_17 = arith.constant 0 : index
    %21 = vector.load %arg8[%c0_16, %c0_17] : memref<1x128xf32, #tpu.memory_space<vmem>>, vector<1x128xf32>
    %22 = vector.broadcast %21 : vector<1x128xf32> to vector<64x128xf32>
    %23 = arith.addf %20, %22 : vector<64x128xf32>
    %c0_18 = arith.constant 0 : index
    %c0_19 = arith.constant 0 : index
    %24 = vector.load %arg10[%c0_18, %c0_19] : memref<64x128xf32, #tpu.memory_space<vmem>>, vector<64x128xf32>
    tpu.vector_store %arg10[%c0_18, %c0_19], %23 {strides = array<i32>} : memref<64x128xf32, #tpu.memory_space<vmem>>, vector<64x128xf32>,
    %c0_20 = arith.constant 0 : index
    %c0_21 = arith.constant 0 : index
    %25 = vector.load %arg7[%c0_20, %c0_21] : memref<128x128xbf16, #tpu.memory_space<vmem>>, vector<128x128xbf16>
    %cst_22 = arith.constant dense<0.000000e+00> : vector<64x128xf32>
    %26 = tpu.matmul %18, %25, %cst_22 {dimension_numbers = #tpu.dot_dimension_numbers<[1], [0], [0], [1], [0, 0, 1, 1], [], []>} : vector<64x128xbf16>, vector<128x128xbf16>, vector<64x128xf32> -> vector<64x128xf32>
    %c0_23 = arith.constant 0 : index
    %c0_24 = arith.constant 0 : index
    %27 = vector.load %arg9[%c0_23, %c0_24] : memref<1x128xf32, #tpu.memory_space<vmem>>, vector<1x128xf32>
    %28 = vector.broadcast %27 : vector<1x128xf32> to vector<64x128xf32>
    %29 = arith.addf %26, %28 : vector<64x128xf32>
    %c0_25 = arith.constant 0 : index
    %c0_26 = arith.constant 0 : index
    %30 = vector.load %arg11[%c0_25, %c0_26] : memref<64x128xf32, #tpu.memory_space<vmem>>, vector<64x128xf32>
    tpu.vector_store %arg11[%c0_25, %c0_26], %29 {strides = array<i32>} : memref<64x128xf32, #tpu.memory_space<vmem>>, vector<64x128xf32>,
    return
  }
  func.func @transform_0(%arg0: i32) -> (i32, i32) {
    %c0_i32 = arith.constant 0 : i32
    %c0_i32_0 = arith.constant 0 : i32
    return %arg0, %c0_i32 : i32, i32
  }
  func.func @transform_1(%arg0: i32) -> (i32, i32) {
    %c0_i32 = arith.constant 0 : i32
    %c0_i32_0 = arith.constant 0 : i32
    return %arg0, %c0_i32 : i32, i32
  }
  func.func @transform_2(%arg0: i32) -> (i32, i32) {
    %c0_i32 = arith.constant 0 : i32
    %c0_i32_0 = arith.constant 0 : i32
    %c0_i32_1 = arith.constant 0 : i32
    return %c0_i32, %c0_i32_0 : i32, i32
  }
  func.func @transform_3(%arg0: i32) -> (i32, i32) {
    %c0_i32 = arith.constant 0 : i32
    %c0_i32_0 = arith.constant 0 : i32
    %c0_i32_1 = arith.constant 0 : i32
    return %c0_i32, %c0_i32_0 : i32, i32
  }
  func.func @transform_4(%arg0: i32) -> (i32, i32) {
    %c0_i32 = arith.constant 0 : i32
    %c0_i32_0 = arith.constant 0 : i32
    %c0_i32_1 = arith.constant 0 : i32
    return %c0_i32, %c0_i32_0 : i32, i32
  }
  func.func @transform_5(%arg0: i32) -> (i32, i32) {
    %c0_i32 = arith.constant 0 : i32
    %c0_i32_0 = arith.constant 0 : i32
    %c0_i32_1 = arith.constant 0 : i32
    return %c0_i32, %c0_i32_0 : i32, i32
  }
  func.func @transform_6(%arg0: i32) -> (i32, i32) {
    %c0_i32 = arith.constant 0 : i32
    %c0_i32_0 = arith.constant 0 : i32
    %c0_i32_1 = arith.constant 0 : i32
    return %c0_i32, %c0_i32_0 : i32, i32
  }
  func.func @transform_7(%arg0: i32) -> (i32, i32) {
    %c0_i32 = arith.constant 0 : i32
    %c0_i32_0 = arith.constant 0 : i32
    %c0_i32_1 = arith.constant 0 : i32
    return %c0_i32, %c0_i32_0 : i32, i32
  }
  func.func @transform_8(%arg0: i32) -> (i32, i32) {
    %c0_i32 = arith.constant 0 : i32
    %c0_i32_0 = arith.constant 0 : i32
    %c0_i32_1 = arith.constant 0 : i32
    return %c0_i32, %c0_i32_0 : i32, i32
  }
  func.func @transform_9(%arg0: i32) -> (i32, i32) {
    %c0_i32 = arith.constant 0 : i32
    %c0_i32_0 = arith.constant 0 : i32
    return %arg0, %c0_i32 : i32, i32
  }
  func.func @transform_10(%arg0: i32) -> (i32, i32) {
    %c0_i32 = arith.constant 0 : i32
    %c0_i32_0 = arith.constant 0 : i32
    return %arg0, %c0_i32 : i32, i32
  }
}

</mosaic_0001>

<llo_original>
// kernel: tpu_custom_call.1
$region0: #{tpu_custom_call.1}
  #allocation0 [shape = 'u32[]', space=smem, size = 0x4, offset = 0x4, fixed_abs, tag = 'smem constant byte address 0x4 - core index']
  #allocation1 [shape = 'u32[144,128]{1,0:T(1,128)}', space=vmem, size = 0x12000, scoped, tag = 'internal scratch']
  %s0 = inlined_call_operand.hbm [shape: bf16[128,128], index: 0, kind: input, shape index: {}]
  %s1 = inlined_call_operand.hbm [shape: bf16[128,128], index: 1, kind: input, shape index: {}]
  %s2 = inlined_call_operand.hbm [shape: bf16[128,128], index: 2, kind: input, shape index: {}]
  %s3 = inlined_call_operand.hbm [shape: bf16[128,128], index: 3, kind: input, shape index: {}]
  %s4 = inlined_call_operand.vmem [shape: f32[1,128], index: 4, kind: input, shape index: {}]
  %s5 = inlined_call_operand.hbm [shape: bf16[128,128], index: 5, kind: input, shape index: {}]
  %s6 = inlined_call_operand.hbm [shape: bf16[128,128], index: 6, kind: input, shape index: {}]
  %s7 = inlined_call_operand.vmem [shape: f32[1,128], index: 7, kind: input, shape index: {}]
  %s8 = inlined_call_operand.vmem [shape: f32[1,128], index: 8, kind: input, shape index: {}]
  %s9 = inlined_call_operand.hbm [shape: f32[128,128], index: 9, kind: output, shape index: {0}]
  %s10 = inlined_call_operand.hbm [shape: f32[128,128], index: 10, kind: output, shape index: {1}]
  %11 = xla_tuple %s9, %s10
  %s12 = sld [smem:[#allocation0]]
  $region101: #{tpu_custom_call.1} parent=0
    _
  %s14 = ssub.s32 1, %s12
  %s15 = scalar_select 0, %s14, %s12
  $region1: #{tpu_custom_call.1} parent=0
    #allocation2 [shape = 'u8[32768]{0}', space=vmem, size = 0x8000, scoped, tag = 'input window, operand 0']
    #allocation3 [shape = 's32[2]{0}', space=sflag, size = 0x8, scoped, tag = 'scoped memory for tpu_custom_call.1']
    #allocation4 [shape = 's32[2]{0}', space=sflag, size = 0x8, scoped, tag = 'scoped memory for tpu_custom_call.1']
    #allocation5 [shape = 'u8[32768]{0}', space=vmem, size = 0x8000, scoped, tag = 'input window, operand 1']
    #allocation6 [shape = 's32[2]{0}', space=sflag, size = 0x8, scoped, tag = 'scoped memory for tpu_custom_call.1']
    #allocation7 [shape = 'u8[32768]{0}', space=vmem, size = 0x8000, scoped, tag = 'input window, operand 2, single buffered']
    #allocation8 [shape = 'u8[32768]{0}', space=vmem, size = 0x8000, scoped, tag = 'input window, operand 3, single buffered']
    #allocation9 [shape = 's32[1]{0}', space=sflag, size = 0x4, scoped, tag = 'scoped memory for tpu_custom_call.1']
    #allocation10 [shape = 'u8[32768]{0}', space=vmem, size = 0x8000, scoped, tag = 'input window, operand 5, single buffered']
    #allocation11 [shape = 'u8[32768]{0}', space=vmem, size = 0x8000, scoped, tag = 'input window, operand 6, single buffered']
    #allocation12 [shape = 's32[1]{0}', space=sflag, size = 0x4, scoped, tag = 'scoped memory for tpu_custom_call.1']
    #allocation13 [shape = 'u8[65536]{0}', space=vmem, size = 0x10000, scoped, tag = 'output window, operand 0']
    #allocation14 [shape = 'u8[65536]{0}', space=vmem, size = 0x10000, scoped, tag = 'output window, operand 1']
    #allocation15 [shape = 's32[2]{0}', space=sflag, size = 0x8, scoped, tag = 'scoped memory for tpu_custom_call.1']
    %16 = vsyncpa [#allocation3], 0
    %s17 = scalar_lea.sflag [#allocation3], 1
    %18 = vsyncpa %s17, 0
    %19 = vsyncpa [#allocation6], 0
    %s20 = scalar_lea.sflag [#allocation6], 1
    %21 = vsyncpa %s20, 0
    %22 = vsyncpa [#allocation9], 0
    %23 = vsyncpa [#allocation12], 0
    %24 = vsyncpa [#allocation4], 0
    %s25 = scalar_lea.sflag [#allocation4], 1
    %26 = vsyncpa %s25, 0
    %27 = vsyncpa [#allocation15], 0
    %s28 = scalar_lea.sflag [#allocation15], 1
    %29 = vsyncpa %s28, 0
    loop: start=0, step=1, limit=4
    $region2: #{tpu_custom_call.1} parent=1 // loop_pre_header
      _
    $region3: #{tpu_custom_call.1} parent=1 // loop_header
      %s31 = sphi 0, %s35
      %p32 = scmp.ge.s32.totalorder %s31, 4
      %s41 = sphi 0, %s43
      %s44 = sphi 0, %s41
      %s45 = sphi 0, %s44
      %s61 = sphi 0, %s45
      %s67 = sphi 0, %s69
      %s70 = sphi 0, %s67
      %s71 = sphi 0, %s70
      %s87 = sphi 0, %s71
      %s91 = sphi 0, %s91
      %s93 = sphi 0, %s91
      %s94 = sphi 0, %s93
      %s108 = sphi 0, %s94
      %s112 = sphi 0, %s112
      %s114 = sphi 0, %s112
      %s115 = sphi 0, %s114
      %s129 = sphi 0, %s115
      %s133 = sphi 0, %s133
      %s135 = sphi 0, %s133
      %s136 = sphi 0, %s135
      %s150 = sphi 0, %s136
      %s154 = sphi 0, %s154
      %s156 = sphi 0, %s154
      %s157 = sphi 0, %s156
      %s171 = sphi 0, %s157
      %s175 = sphi 0, %s175
      %s177 = sphi 0, %s175
      %s178 = sphi 0, %s177
      %s192 = sphi 0, %s178
      %s196 = sphi 0, %s196
      %s198 = sphi 0, %s196
      %s199 = sphi 0, %s198
      %s213 = sphi 0, %s199
      %s217 = sphi 0, %s217
      %s219 = sphi 0, %s217
      %s220 = sphi 0, %s219
      %s234 = sphi 0, %s220
      %s240 = sphi 0, %s242
      %s243 = sphi 0, %s240
      %s244 = sphi 0, %s243
      %s260 = sphi 0, %s244
      %s266 = sphi 0, %s268
      %s269 = sphi 0, %s266
      %s270 = sphi 0, %s269
      %s286 = sphi 0, %s270
    $region4: #{tpu_custom_call.1} parent=1 // loop_header_branch
      %34 = sbr.rel (%p32) target = $region8
    $region5: #{tpu_custom_call.1} parent=1 // loop_body
      %s36 = ssub.s32 %s31, 1
      %s37 = ssub.s32 %s31, 2
      %s38 = sadd.s32 %s31, 1
      %s39 = ssub.s32 %s31, %s38
      %p40 = scmp.eq.s32.totalorder %s39, 0
      %s42 = sadd.s32 %s41, 1
      %s43 = scalar_select %p40, %s41, %s42
      %p46 = pneg %p40
      %p47 = scmp.eq.s32.totalorder %s31, 1
      %p48 = por %p46, %p47
      %p49 = scmp.ne.s32.totalorder %s41, %s44
      %p50 = scmp.eq.s32.totalorder %s31, 0
      %p51 = por %p49, %p50
      %p52 = scmp.ne.s32.totalorder %s41, %s44
      %p53 = scmp.eq.s32.totalorder %s36, 1
      %p54 = por %p52, %p53
      %p55 = scmp.ne.s32.totalorder %s44, %s45
      %p56 = scmp.eq.s32.totalorder %s36, 0
      %p57 = por %p55, %p56
      %p58 = scmp.ne.s32.totalorder %s44, %s45
      %p59 = scmp.eq.s32.totalorder %s37, 1
      %p60 = por %p58, %p59
      %p62 = scmp.ne.s32.totalorder %s45, %s61
      %p63 = scmp.eq.s32.totalorder %s37, 0
      %p64 = por %p62, %p63
      %s65 = ssub.s32 %s31, %s38
      %p66 = scmp.eq.s32.totalorder %s65, 0
      %s68 = sadd.s32 %s67, 1
      %s69 = scalar_select %p66, %s67, %s68
      %p72 = pneg %p66
      %p73 = scmp.eq.s32.totalorder %s31, 1
      %p74 = por %p72, %p73
      %p75 = scmp.ne.s32.totalorder %s67, %s70
      %p76 = scmp.eq.s32.totalorder %s31, 0
      %p77 = por %p75, %p76
      %p78 = scmp.ne.s32.totalorder %s67, %s70
      %p79 = scmp.eq.s32.totalorder %s36, 1
      %p80 = por %p78, %p79
      %p81 = scmp.ne.s32.totalorder %s70, %s71
      %p82 = scmp.eq.s32.totalorder %s36, 0
      %p83 = por %p81, %p82
      %p84 = scmp.ne.s32.totalorder %s70, %s71
      %p85 = scmp.eq.s32.totalorder %s37, 1
      %p86 = por %p84, %p85
      %p88 = scmp.ne.s32.totalorder %s71, %s87
      %p89 = scmp.eq.s32.totalorder %s37, 0
      %p90 = por %p88, %p89
      %s92 = sadd.s32 %s91, 1
      %p95 = scmp.eq.s32.totalorder %s31, 1
      %p96 = scmp.ne.s32.totalorder %s91, %s93
      %p97 = scmp.eq.s32.totalorder %s31, 0
      %p98 = por %p96, %p97
      %p99 = scmp.ne.s32.totalorder %s91, %s93
      %p100 = scmp.eq.s32.totalorder %s36, 1
      %p101 = por %p99, %p100
      %p102 = scmp.ne.s32.totalorder %s93, %s94
      %p103 = scmp.eq.s32.totalorder %s36, 0
      %p104 = por %p102, %p103
      %p105 = scmp.ne.s32.totalorder %s93, %s94
      %p106 = scmp.eq.s32.totalorder %s37, 1
      %p107 = por %p105, %p106
      %p109 = scmp.ne.s32.totalorder %s94, %s108
      %p110 = scmp.eq.s32.totalorder %s37, 0
      %p111 = por %p109, %p110
      %s113 = sadd.s32 %s112, 1
      %p116 = scmp.eq.s32.totalorder %s31, 1
      %p117 = scmp.ne.s32.totalorder %s112, %s114
      %p118 = scmp.eq.s32.totalorder %s31, 0
      %p119 = por %p117, %p118
      %p120 = scmp.ne.s32.totalorder %s112, %s114
      %p121 = scmp.eq.s32.totalorder %s36, 1
      %p122 = por %p120, %p121
      %p123 = scmp.ne.s32.totalorder %s114, %s115
      %p124 = scmp.eq.s32.totalorder %s36, 0
      %p125 = por %p123, %p124
      %p126 = scmp.ne.s32.totalorder %s114, %s115
      %p127 = scmp.eq.s32.totalorder %s37, 1
      %p128 = por %p126, %p127
      %p130 = scmp.ne.s32.totalorder %s115, %s129
      %p131 = scmp.eq.s32.totalorder %s37, 0
      %p132 = por %p130, %p131
      %s134 = sadd.s32 %s133, 1
      %p137 = scmp.eq.s32.totalorder %s31, 1
      %p138 = scmp.ne.s32.totalorder %s133, %s135
      %p139 = scmp.eq.s32.totalorder %s31, 0
      %p140 = por %p138, %p139
      %p141 = scmp.ne.s32.totalorder %s133, %s135
      %p142 = scmp.eq.s32.totalorder %s36, 1
      %p143 = por %p141, %p142
      %p144 = scmp.ne.s32.totalorder %s135, %s136
      %p145 = scmp.eq.s32.totalorder %s36, 0
      %p146 = por %p144, %p145
      %p147 = scmp.ne.s32.totalorder %s135, %s136
      %p148 = scmp.eq.s32.totalorder %s37, 1
      %p149 = por %p147, %p148
      %p151 = scmp.ne.s32.totalorder %s136, %s150
      %p152 = scmp.eq.s32.totalorder %s37, 0
      %p153 = por %p151, %p152
      %s155 = sadd.s32 %s154, 1
      %p158 = scmp.eq.s32.totalorder %s31, 1
      %p159 = scmp.ne.s32.totalorder %s154, %s156
      %p160 = scmp.eq.s32.totalorder %s31, 0
      %p161 = por %p159, %p160
      %p162 = scmp.ne.s32.totalorder %s154, %s156
      %p163 = scmp.eq.s32.totalorder %s36, 1
      %p164 = por %p162, %p163
      %p165 = scmp.ne.s32.totalorder %s156, %s157
      %p166 = scmp.eq.s32.totalorder %s36, 0
      %p167 = por %p165, %p166
      %p168 = scmp.ne.s32.totalorder %s156, %s157
      %p169 = scmp.eq.s32.totalorder %s37, 1
      %p170 = por %p168, %p169
      %p172 = scmp.ne.s32.totalorder %s157, %s171
      %p173 = scmp.eq.s32.totalorder %s37, 0
      %p174 = por %p172, %p173
      %s176 = sadd.s32 %s175, 1
      %p179 = scmp.eq.s32.totalorder %s31, 1
      %p180 = scmp.ne.s32.totalorder %s175, %s177
      %p181 = scmp.eq.s32.totalorder %s31, 0
      %p182 = por %p180, %p181
      %p183 = scmp.ne.s32.totalorder %s175, %s177
      %p184 = scmp.eq.s32.totalorder %s36, 1
      %p185 = por %p183, %p184
      %p186 = scmp.ne.s32.totalorder %s177, %s178
      %p187 = scmp.eq.s32.totalorder %s36, 0
      %p188 = por %p186, %p187
      %p189 = scmp.ne.s32.totalorder %s177, %s178
      %p190 = scmp.eq.s32.totalorder %s37, 1
      %p191 = por %p189, %p190
      %p193 = scmp.ne.s32.totalorder %s178, %s192
      %p194 = scmp.eq.s32.totalorder %s37, 0
      %p195 = por %p193, %p194
      %s197 = sadd.s32 %s196, 1
      %p200 = scmp.eq.s32.totalorder %s31, 1
      %p201 = scmp.ne.s32.totalorder %s196, %s198
      %p202 = scmp.eq.s32.totalorder %s31, 0
      %p203 = por %p201, %p202
      %p204 = scmp.ne.s32.totalorder %s196, %s198
      %p205 = scmp.eq.s32.totalorder %s36, 1
      %p206 = por %p204, %p205
      %p207 = scmp.ne.s32.totalorder %s198, %s199
      %p208 = scmp.eq.s32.totalorder %s36, 0
      %p209 = por %p207, %p208
      %p210 = scmp.ne.s32.totalorder %s198, %s199
      %p211 = scmp.eq.s32.totalorder %s37, 1
      %p212 = por %p210, %p211
      %p214 = scmp.ne.s32.totalorder %s199, %s213
      %p215 = scmp.eq.s32.totalorder %s37, 0
      %p216 = por %p214, %p215
      %s218 = sadd.s32 %s217, 1
      %p221 = scmp.eq.s32.totalorder %s31, 1
      %p222 = scmp.ne.s32.totalorder %s217, %s219
      %p223 = scmp.eq.s32.totalorder %s31, 0
      %p224 = por %p222, %p223
      %p225 = scmp.ne.s32.totalorder %s217, %s219
      %p226 = scmp.eq.s32.totalorder %s36, 1
      %p227 = por %p225, %p226
      %p228 = scmp.ne.s32.totalorder %s219, %s220
      %p229 = scmp.eq.s32.totalorder %s36, 0
      %p230 = por %p228, %p229
      %p231 = scmp.ne.s32.totalorder %s219, %s220
      %p232 = scmp.eq.s32.totalorder %s37, 1
      %p233 = por %p231, %p232
      %p235 = scmp.ne.s32.totalorder %s220, %s234
      %p236 = scmp.eq.s32.totalorder %s37, 0
      %p237 = por %p235, %p236
      %s238 = ssub.s32 %s31, %s38
      %p239 = scmp.eq.s32.totalorder %s238, 0
      %s241 = sadd.s32 %s240, 1
      %s242 = scalar_select %p239, %s240, %s241
      %p245 = pneg %p239
      %p246 = scmp.eq.s32.totalorder %s31, 1
      %p247 = por %p245, %p246
      %p248 = scmp.ne.s32.totalorder %s240, %s243
      %p249 = scmp.eq.s32.totalorder %s31, 0
      %p250 = por %p248, %p249
      %p251 = scmp.ne.s32.totalorder %s240, %s243
      %p252 = scmp.eq.s32.totalorder %s36, 1
      %p253 = por %p251, %p252
      %p254 = scmp.ne.s32.totalorder %s243, %s244
      %p255 = scmp.eq.s32.totalorder %s36, 0
      %p256 = por %p254, %p255
      %p257 = scmp.ne.s32.totalorder %s243, %s244
      %p258 = scmp.eq.s32.totalorder %s37, 1
      %p259 = por %p257, %p258
      %p261 = scmp.ne.s32.totalorder %s244, %s260
      %p262 = scmp.eq.s32.totalorder %s37, 0
      %p263 = por %p261, %p262
      %s264 = ssub.s32 %s31, %s38
      %p265 = scmp.eq.s32.totalorder %s264, 0
      %s267 = sadd.s32 %s266, 1
      %s268 = scalar_select %p265, %s266, %s267
      %p271 = pneg %p265
      %p272 = scmp.eq.s32.totalorder %s31, 1
      %p273 = por %p271, %p272
      %p274 = scmp.ne.s32.totalorder %s266, %s269
      %p275 = scmp.eq.s32.totalorder %s31, 0
      %p276 = por %p274, %p275
      %p277 = scmp.ne.s32.totalorder %s266, %s269
      %p278 = scmp.eq.s32.totalorder %s36, 1
      %p279 = por %p277, %p278
      %p280 = scmp.ne.s32.totalorder %s269, %s270
      %p281 = scmp.eq.s32.totalorder %s36, 0
      %p282 = por %p280, %p281
      %p283 = scmp.ne.s32.totalorder %s269, %s270
      %p284 = scmp.eq.s32.totalorder %s37, 1
      %p285 = por %p283, %p284
      %p287 = scmp.ne.s32.totalorder %s270, %s286
      %p288 = scmp.eq.s32.totalorder %s37, 0
      %p289 = por %p287, %p288
      %p290 = scmp.le.s32.totalorder 1, %s31
      %p291 = scmp.lt.s32.totalorder %s31, 3
      %p292 = pnand %p290, %p291
      %p293 = pneg %p292
      // Predicated region
      $region9: #{tpu_custom_call.1} parent=5 // pred_check
        _
      $region10: #{tpu_custom_call.1} parent=5 // pred_check_branch
        %295 = sbr.rel (%p292) target = $region12
      $region11: #{tpu_custom_call.1} parent=5 // pred_region
        %s296 = ssub.s32 %s31, 1
        // Predicated region
        $region13: #{tpu_custom_call.1} parent=11 // pred_check
          %p297 = pneg %p104
        $region14: #{tpu_custom_call.1} parent=11 // pred_check_branch
          %299 = sbr.rel (%p297) target = $region16
        $region15: #{tpu_custom_call.1} parent=11 // pred_region
          %s301 = ssub.s32 1024, 1024
          %302 = vsyncadd [#allocation6], %s301
          %s303 = sshll.u32 [#allocation7], 4
          %s304 = int_to_ptr.vmem [resolvable:$true] %s303
          %309 = dma.hbm_to_vmem [thread:$0]  %s2, 1024, %s304, [#allocation6], 64, 64, 4
        $region16: #{tpu_custom_call.1} parent=11 // pred_fallthru
          _
        // Predicated region
        $region17: #{tpu_custom_call.1} parent=11 // pred_check
          %p310 = pneg %p125
        $region18: #{tpu_custom_call.1} parent=11 // pred_check_branch
          %312 = sbr.rel (%p310) target = $region20
        $region19: #{tpu_custom_call.1} parent=11 // pred_region
          %s314 = ssub.s32 1024, 1024
          %315 = vsyncadd [#allocation9], %s314
          %s316 = sshll.u32 [#allocation8], 4
          %s317 = int_to_ptr.vmem [resolvable:$true] %s316
          %322 = dma.hbm_to_vmem [thread:$0]  %s3, 1024, %s317, [#allocation9], 64, 64, 4
        $region20: #{tpu_custom_call.1} parent=11 // pred_fallthru
          _
        // Predicated region
        $region21: #{tpu_custom_call.1} parent=11 // pred_check
          %p323 = pneg %p146
        $region22: #{tpu_custom_call.1} parent=11 // pred_check_branch
          %325 = sbr.rel (%p323) target = $region24
        $region23: #{tpu_custom_call.1} parent=11 // pred_region
          _
        $region24: #{tpu_custom_call.1} parent=11 // pred_fallthru
          _
        // Predicated region
        $region25: #{tpu_custom_call.1} parent=11 // pred_check
          %p326 = pneg %p167
        $region26: #{tpu_custom_call.1} parent=11 // pred_check_branch
          %328 = sbr.rel (%p326) target = $region28
        $region27: #{tpu_custom_call.1} parent=11 // pred_region
          %s330 = ssub.s32 1024, 1024
          %331 = vsyncadd [#allocation9], %s330
          %s332 = sshll.u32 [#allocation10], 4
          %s333 = int_to_ptr.vmem [resolvable:$true] %s332
          %338 = dma.hbm_to_vmem [thread:$0]  %s5, 1024, %s333, [#allocation9], 64, 64, 4
        $region28: #{tpu_custom_call.1} parent=11 // pred_fallthru
          _
        // Predicated region
        $region29: #{tpu_custom_call.1} parent=11 // pred_check
          %p339 = pneg %p188
        $region30: #{tpu_custom_call.1} parent=11 // pred_check_branch
          %341 = sbr.rel (%p339) target = $region32
        $region31: #{tpu_custom_call.1} parent=11 // pred_region
          %s343 = ssub.s32 1024, 1024
          %344 = vsyncadd [#allocation12], %s343
          %s345 = sshll.u32 [#allocation11], 4
          %s346 = int_to_ptr.vmem [resolvable:$true] %s345
          %351 = dma.hbm_to_vmem [thread:$0]  %s6, 1024, %s346, [#allocation12], 64, 64, 4
        $region32: #{tpu_custom_call.1} parent=11 // pred_fallthru
          _
        // Predicated region
        $region33: #{tpu_custom_call.1} parent=11 // pred_check
          %p352 = pneg %p209
        $region34: #{tpu_custom_call.1} parent=11 // pred_check_branch
          %354 = sbr.rel (%p352) target = $region36
        $region35: #{tpu_custom_call.1} parent=11 // pred_region
          _
        $region36: #{tpu_custom_call.1} parent=11 // pred_fallthru
          _
        // Predicated region
        $region37: #{tpu_custom_call.1} parent=11 // pred_check
          %p355 = pneg %p230
        $region38: #{tpu_custom_call.1} parent=11 // pred_check_branch
          %357 = sbr.rel (%p355) target = $region40
        $region39: #{tpu_custom_call.1} parent=11 // pred_region
          _
        $region40: #{tpu_custom_call.1} parent=11 // pred_fallthru
          _
      $region12: #{tpu_custom_call.1} parent=5 // pred_fallthru
        _
      %p358 = scmp.lt.s32.totalorder %s31, 2
      // Predicated region
      $region41: #{tpu_custom_call.1} parent=5 // pred_check
        %p359 = pneg %p358
      $region42: #{tpu_custom_call.1} parent=5 // pred_check_branch
        %361 = sbr.rel (%p359) target = $region44
      $region43: #{tpu_custom_call.1} parent=5 // pred_region
        // Predicated region
        $region45: #{tpu_custom_call.1} parent=43 // pred_check
          %p362 = pneg %p51
        $region46: #{tpu_custom_call.1} parent=43 // pred_check_branch
          %364 = sbr.rel (%p362) target = $region48
        $region47: #{tpu_custom_call.1} parent=43 // pred_region
          %s365 = sand.u32 %s41, 1
          %s366 = scalar_lea.sflag [#allocation3], %s365
          %s367 = sand.u32 %s41, 1
          %s368 = smul.addr %s367, 32
          %s369 = scalar_lea.vmem [#allocation2], %s368
          %s370 = smul.u32 8, %s31
          %s372 = ssub.s32 512, 512
          %373 = vsyncadd %s366, %s372
          %s374 = smul.addr %s370, 64
          %s375 = scalar_lea.hbm %s0, %s374
          %s376 = sshll.u32 %s369, 4
          %s377 = int_to_ptr.vmem [resolvable:$true] %s376
          %382 = dma.hbm_to_vmem [thread:$0]  %s375, 512, %s377, %s366, 64, 64, 4
        $region48: #{tpu_custom_call.1} parent=43 // pred_fallthru
          _
        // Predicated region
        $region49: #{tpu_custom_call.1} parent=43 // pred_check
          %p383 = pneg %p77
        $region50: #{tpu_custom_call.1} parent=43 // pred_check_branch
          %385 = sbr.rel (%p383) target = $region52
        $region51: #{tpu_custom_call.1} parent=43 // pred_region
          %s386 = sand.u32 %s31, 1
          %s387 = scalar_lea.sflag [#allocation6], %s386
          %s388 = sand.u32 %s67, 1
          %s389 = smul.addr %s388, 32
          %s390 = scalar_lea.vmem [#allocation5], %s389
          %s391 = smul.u32 8, %s31
          %s393 = ssub.s32 512, 512
          %394 = vsyncadd %s387, %s393
          %s395 = smul.addr %s391, 64
          %s396 = scalar_lea.hbm %s1, %s395
          %s397 = sshll.u32 %s390, 4
          %s398 = int_to_ptr.vmem [resolvable:$true] %s397
          %403 = dma.hbm_to_vmem [thread:$0]  %s396, 512, %s398, %s387, 64, 64, 4
        $region52: #{tpu_custom_call.1} parent=43 // pred_fallthru
          _
      $region44: #{tpu_custom_call.1} parent=5 // pred_fallthru
        _
      %p404 = scmp.le.s32.totalorder 1, %s31
      %p405 = scmp.lt.s32.totalorder %s31, 3
      %p406 = pnand %p404, %p405
      %p407 = pneg %p406
      // Predicated region
      $region53: #{tpu_custom_call.1} parent=5 // pred_check
        _
      $region54: #{tpu_custom_call.1} parent=5 // pred_check_branch
        %409 = sbr.rel (%p406) target = $region56
      $region55: #{tpu_custom_call.1} parent=5 // pred_region
        %s410 = ssub.s32 %s31, 1
        %s411 = sand.u32 %s44, 1
        %s412 = scalar_lea.sflag [#allocation3], %s411
        %s413 = sand.u32 %s44, 1
        %s414 = smul.addr %s413, 32
        %s415 = scalar_lea.vmem [#allocation2], %s414
        // Predicated region
        $region57: #{tpu_custom_call.1} parent=55 // pred_check
          %p416 = pneg %p57
        $region58: #{tpu_custom_call.1} parent=55 // pred_check_branch
          %418 = sbr.rel (%p416) target = $region60
        $region59: #{tpu_custom_call.1} parent=55 // pred_region
          %419 = dma.done %s412, 512
        $region60: #{tpu_custom_call.1} parent=55 // pred_fallthru
          _
        %s420 = sand.u32 %s36, 1
        %s421 = scalar_lea.sflag [#allocation6], %s420
        %s422 = sand.u32 %s70, 1
        %s423 = smul.addr %s422, 32
        %s424 = scalar_lea.vmem [#allocation5], %s423
        // Predicated region
        $region61: #{tpu_custom_call.1} parent=55 // pred_check
          %p425 = pneg %p83
        $region62: #{tpu_custom_call.1} parent=55 // pred_check_branch
          %427 = sbr.rel (%p425) target = $region64
        $region63: #{tpu_custom_call.1} parent=55 // pred_region
          %428 = dma.done %s421, 512
        $region64: #{tpu_custom_call.1} parent=55 // pred_fallthru
          _
        // Predicated region
        $region65: #{tpu_custom_call.1} parent=55 // pred_check
          %p429 = pneg %p104
        $region66: #{tpu_custom_call.1} parent=55 // pred_check_branch
          %431 = sbr.rel (%p429) target = $region68
        $region67: #{tpu_custom_call.1} parent=55 // pred_region
          %432 = dma.done [#allocation6], 1024
        $region68: #{tpu_custom_call.1} parent=55 // pred_fallthru
          _
        // Predicated region
        $region69: #{tpu_custom_call.1} parent=55 // pred_check
          %p433 = pneg %p125
        $region70: #{tpu_custom_call.1} parent=55 // pred_check_branch
          %435 = sbr.rel (%p433) target = $region72
        $region71: #{tpu_custom_call.1} parent=55 // pred_region
          %436 = dma.done [#allocation9], 1024
        $region72: #{tpu_custom_call.1} parent=55 // pred_fallthru
          _
        // Predicated region
        $region73: #{tpu_custom_call.1} parent=55 // pred_check
          %p437 = pneg %p167
        $region74: #{tpu_custom_call.1} parent=55 // pred_check_branch
          %439 = sbr.rel (%p437) target = $region76
        $region75: #{tpu_custom_call.1} parent=55 // pred_region
          %440 = dma.done [#allocation9], 1024
        $region76: #{tpu_custom_call.1} parent=55 // pred_fallthru
          _
        // Predicated region
        $region77: #{tpu_custom_call.1} parent=55 // pred_check
          %p441 = pneg %p188
        $region78: #{tpu_custom_call.1} parent=55 // pred_check_branch
          %443 = sbr.rel (%p441) target = $region80
        $region79: #{tpu_custom_call.1} parent=55 // pred_region
          %444 = dma.done [#allocation12], 1024
        $region80: #{tpu_custom_call.1} parent=55 // pred_fallthru
          _
        %s445 = sand.u32 %s44, 1
        %s446 = scalar_lea.sflag [#allocation3], %s445
        %s447 = sand.u32 %s44, 1
        %s448 = smul.addr %s447, 32
        %s449 = scalar_lea.vmem [#allocation2], %s448
        %p450 = pneg %p57
        %p451 = pneg %p54
        %s452 = sand.u32 %s36, 1
        %s453 = scalar_lea.sflag [#allocation6], %s452
        %s454 = sand.u32 %s70, 1
        %s455 = smul.addr %s454, 32
        %s456 = scalar_lea.vmem [#allocation5], %s455
        %p457 = pneg %p83
        %p458 = pneg %p80
        %p459 = pneg %p104
        %p460 = pneg %p101
        %p461 = pneg %p125
        %p462 = pneg %p122
        %p463 = pneg %p146
        %p464 = pneg %p143
        %p465 = pneg %p167
        %p466 = pneg %p164
        %p467 = pneg %p188
        %p468 = pneg %p185
        %p469 = pneg %p209
        %p470 = pneg %p206
        %p471 = pneg %p230
        %p472 = pneg %p227
        %p473 = pneg %p256
        %p474 = pneg %p253
        %s475 = sand.u32 %s243, 1
        %s476 = scalar_lea.sflag [#allocation4], %s475
        %s477 = sand.u32 %s243, 1
        %s478 = smul.addr %s477, 64
        %s479 = scalar_lea.vmem [#allocation13], %s478
        %p480 = pneg %p282
        %p481 = pneg %p279
        %s482 = sand.u32 %s269, 1
        %s483 = scalar_lea.sflag [#allocation15], %s482
        %s484 = sand.u32 %s269, 1
        %s485 = smul.addr %s484, 64
        %s486 = scalar_lea.vmem [#allocation14], %s485
        %s487 = smul.u32 8, %s36
        %s488 = smul.u32 8, %s36
        %s489 = smul.u32 8, %s36
        %s490 = smul.u32 8, %s36
        %v492 = vld [vmem:[%s415] sm:$0xf]
        %v493 = vld [vmem:[%s415 + $0x4] sm:$0xf]
        %v494 = vld [vmem:[%s415 + $0x8] sm:$0xf]
        %v495 = vld [vmem:[%s415 + $0xc] sm:$0xf]
        %v496 = vld [vmem:[%s415 + $0x10] sm:$0xf]
        %v497 = vld [vmem:[%s415 + $0x14] sm:$0xf]
        %v498 = vld [vmem:[%s415 + $0x18] sm:$0xf]
        %v499 = vld [vmem:[%s415 + $0x1c] sm:$0xf]
        %v500 = vld [vmem:[%s424] sm:$0xf]
        %v501 = vld [vmem:[%s424 + $0x4] sm:$0xf]
        %v502 = vld [vmem:[%s424 + $0x8] sm:$0xf]
        %v503 = vld [vmem:[%s424 + $0xc] sm:$0xf]
        %v504 = vld [vmem:[%s424 + $0x10] sm:$0xf]
        %v505 = vld [vmem:[%s424 + $0x14] sm:$0xf]
        %v506 = vld [vmem:[%s424 + $0x18] sm:$0xf]
        %v507 = vld [vmem:[%s424 + $0x1c] sm:$0xf]
        %v508 = vld [vmem:[#allocation7] sm:$0xf]
        %v509 = vld [vmem:[#allocation7 + $0x4] sm:$0xf]
        %v510 = vld [vmem:[#allocation7 + $0x8] sm:$0xf]
        %v511 = vld [vmem:[#allocation7 + $0xc] sm:$0xf]
        %v512 = vld [vmem:[#allocation7 + $0x10] sm:$0xf]
        %v513 = vld [vmem:[#allocation7 + $0x14] sm:$0xf]
        %v514 = vld [vmem:[#allocation7 + $0x18] sm:$0xf]
        %v515 = vld [vmem:[#allocation7 + $0x1c] sm:$0xf]
        %v516 = vld [vmem:[#allocation7 + $0x20] sm:$0xf]
        %v517 = vld [vmem:[#allocation7 + $0x24] sm:$0xf]
        %v518 = vld [vmem:[#allocation7 + $0x28] sm:$0xf]
        %v519 = vld [vmem:[#allocation7 + $0x2c] sm:$0xf]
        %v520 = vld [vmem:[#allocation7 + $0x30] sm:$0xf]
        %v521 = vld [vmem:[#allocation7 + $0x34] sm:$0xf]
        %v522 = vld [vmem:[#allocation7 + $0x38] sm:$0xf]
        %v523 = vld [vmem:[#allocation7 + $0x3c] sm:$0xf]
        %v524 = vld [vmem:[#allocation8] sm:$0xf]
        %v525 = vld [vmem:[#allocation8 + $0x4] sm:$0xf]
        %v526 = vld [vmem:[#allocation8 + $0x8] sm:$0xf]
        %v527 = vld [vmem:[#allocation8 + $0xc] sm:$0xf]
        %v528 = vld [vmem:[#allocation8 + $0x10] sm:$0xf]
        %v529 = vld [vmem:[#allocation8 + $0x14] sm:$0xf]
        %v530 = vld [vmem:[#allocation8 + $0x18] sm:$0xf]
        %v531 = vld [vmem:[#allocation8 + $0x1c] sm:$0xf]
        %v532 = vld [vmem:[#allocation8 + $0x20] sm:$0xf]
        %v533 = vld [vmem:[#allocation8 + $0x24] sm:$0xf]
        %v534 = vld [vmem:[#allocation8 + $0x28] sm:$0xf]
        %v535 = vld [vmem:[#allocation8 + $0x2c] sm:$0xf]
        %v536 = vld [vmem:[#allocation8 + $0x30] sm:$0xf]
        %v537 = vld [vmem:[#allocation8 + $0x34] sm:$0xf]
        %v538 = vld [vmem:[#allocation8 + $0x38] sm:$0xf]
        %v539 = vld [vmem:[#allocation8 + $0x3c] sm:$0xf]
        %v548 = vunpack.c.l.b16 %v500
        %v549 = vunpack.c.l.b16 %v501
        %v550 = vunpack.c.l.b16 %v502
        %v551 = vunpack.c.l.b16 %v503
        %v552 = vunpack.c.l.b16 %v504
        %v553 = vunpack.c.l.b16 %v505
        %v554 = vunpack.c.l.b16 %v506
        %v555 = vunpack.c.l.b16 %v507
        %v556 = vpack.c.b16 %v549, %v548
        %v557 = vpack.c.b16 %v551, %v550
        %v558 = vpack.c.b16 %v553, %v552
        %v559 = vpack.c.b16 %v555, %v554
        %v580 = vunpack.c.l.b16 %v524
        %v581 = vunpack.c.l.b16 %v525
        %v582 = vunpack.c.l.b16 %v526
        %v583 = vunpack.c.l.b16 %v527
        %v584 = vunpack.c.l.b16 %v528
        %v585 = vunpack.c.l.b16 %v529
        %v586 = vunpack.c.l.b16 %v530
        %v587 = vunpack.c.l.b16 %v531
        %v588 = vunpack.c.l.b16 %v532
        %v589 = vunpack.c.l.b16 %v533
        %v590 = vunpack.c.l.b16 %v534
        %v591 = vunpack.c.l.b16 %v535
        %v592 = vunpack.c.l.b16 %v536
        %v593 = vunpack.c.l.b16 %v537
        %v594 = vunpack.c.l.b16 %v538
        %v595 = vunpack.c.l.b16 %v539
        %v596 = vpack.c.b16 %v581, %v580
        %v597 = vpack.c.b16 %v583, %v582
        %v598 = vpack.c.b16 %v585, %v584
        %v599 = vpack.c.b16 %v587, %v586
        %v600 = vpack.c.b16 %v589, %v588
        %v601 = vpack.c.b16 %v591, %v590
        %v602 = vpack.c.b16 %v593, %v592
        %v603 = vpack.c.b16 %v595, %v594
        %612 = vmatprep.subr.bf16.mxu0 0
        %613 = vmatpush1.bf16.msra.mxu0 %v596
        %614 = vmatprep.subr.bf16.mxu0 0
        %615 = vmatpush1.bf16.msra.mxu0 %v597
        %616 = vmatprep.subr.bf16.mxu0 0
        %617 = vmatpush1.bf16.msra.mxu0 %v598
        %618 = vmatprep.subr.bf16.mxu0 0
        %619 = vmatpush1.bf16.msra.mxu0 %v599
        %620 = vmatprep.subr.bf16.mxu0 0
        %621 = vmatpush1.bf16.msra.mxu0 %v600
        %622 = vmatprep.subr.bf16.mxu0 0
        %623 = vmatpush1.bf16.msra.mxu0 %v601
        %624 = vmatprep.subr.bf16.mxu0 0
        %625 = vmatpush1.bf16.msra.mxu0 %v602
        %626 = vmatprep.subr.bf16.mxu0 0
        %627 = vmatpush1.bf16.msra.mxu0 %v603
        %628 = vmatprep.subr.bf16.mxu0 0
        %629 = vmatpush1.bf16.msra.mxu0 0
        %630 = vmatprep.subr.bf16.mxu0 0
        %631 = vmatpush1.bf16.msra.mxu0 0
        %632 = vmatprep.subr.bf16.mxu0 0
        %633 = vmatpush1.bf16.msra.mxu0 0
        %634 = vmatprep.subr.bf16.mxu0 0
        %635 = vmatpush1.bf16.msra.mxu0 0
        %636 = vmatprep.subr.bf16.mxu0 0
        %637 = vmatpush1.bf16.msra.mxu0 0
        %638 = vmatprep.subr.bf16.mxu0 0
        %639 = vmatpush1.bf16.msra.mxu0 0
        %640 = vmatprep.subr.bf16.mxu0 0
        %641 = vmatpush1.bf16.msra.mxu0 0
        %642 = vmatprep.subr.bf16.mxu0 0
        %643 = vmatpush1.bf16.msra.mxu0 0
        %644 = vmatprep.mubr.bf16.mxu0 0
        %645 = vmatmul.mubr.bf16.gmra.mrb[0].mxu0 %v556
        %v646 = vpop.f32.mrb[0].mxu0
        %v647 = vadd.f32 0.0, %v646
        %v648 = vpop.f32.mrb[0].mxu0
        %v649 = vpop.f32.mrb[0].mxu0
        %v650 = vadd.f32 0.0, %v649
        %v651 = vpop.f32.mrb[0].mxu0
        %652 = vmatprep.mubr.bf16.mxu0 0
        %653 = vmatmul.mubr.bf16.gmra.mrb[0].mxu0 %v557
        %v654 = vpop.f32.mrb[0].mxu0
        %v655 = vadd.f32 0.0, %v654
        %v656 = vpop.f32.mrb[0].mxu0
        %v657 = vpop.f32.mrb[0].mxu0
        %v658 = vadd.f32 0.0, %v657
        %v659 = vpop.f32.mrb[0].mxu0
        %660 = vmatprep.mubr.bf16.mxu0 0
        %661 = vmatmul.mubr.bf16.gmra.mrb[0].mxu0 %v558
        %v662 = vpop.f32.mrb[0].mxu0
        %v663 = vadd.f32 0.0, %v662
        %v664 = vpop.f32.mrb[0].mxu0
        %v665 = vpop.f32.mrb[0].mxu0
        %v666 = vadd.f32 0.0, %v665
        %v667 = vpop.f32.mrb[0].mxu0
        %668 = vmatprep.mubr.bf16.mxu0 0
        %669 = vmatmul.mubr.bf16.gmra.mrb[0].mxu0 %v559
        %v670 = vpop.f32.mrb[0].mxu0
        %v671 = vadd.f32 0.0, %v670
        %v672 = vpop.f32.mrb[0].mxu0
        %v673 = vpop.f32.mrb[0].mxu0
        %v674 = vadd.f32 0.0, %v673
        %v675 = vpop.f32.mrb[0].mxu0
        %676 = vdwg.mxu0
        %v685 = vunpack.c.l.b16 %v492
        %v686 = vunpack.c.l.b16 %v493
        %v687 = vunpack.c.l.b16 %v494
        %v688 = vunpack.c.l.b16 %v495
        %v689 = vunpack.c.l.b16 %v496
        %v690 = vunpack.c.l.b16 %v497
        %v691 = vunpack.c.l.b16 %v498
        %v692 = vunpack.c.l.b16 %v499
        %v693 = vpack.c.b16 %v686, %v685
        %v694 = vpack.c.b16 %v688, %v687
        %v695 = vpack.c.b16 %v690, %v689
        %v696 = vpack.c.b16 %v692, %v691
        %v717 = vunpack.c.l.b16 %v508
        %v718 = vunpack.c.l.b16 %v509
        %v719 = vunpack.c.l.b16 %v510
        %v720 = vunpack.c.l.b16 %v511
        %v721 = vunpack.c.l.b16 %v512
        %v722 = vunpack.c.l.b16 %v513
        %v723 = vunpack.c.l.b16 %v514
        %v724 = vunpack.c.l.b16 %v515
        %v725 = vunpack.c.l.b16 %v516
        %v726 = vunpack.c.l.b16 %v517
        %v727 = vunpack.c.l.b16 %v518
        %v728 = vunpack.c.l.b16 %v519
        %v729 = vunpack.c.l.b16 %v520
        %v730 = vunpack.c.l.b16 %v521
        %v731 = vunpack.c.l.b16 %v522
        %v732 = vunpack.c.l.b16 %v523
        %v733 = vpack.c.b16 %v718, %v717
        %v734 = vpack.c.b16 %v720, %v719
        %v735 = vpack.c.b16 %v722, %v721
        %v736 = vpack.c.b16 %v724, %v723
        %v737 = vpack.c.b16 %v726, %v725
        %v738 = vpack.c.b16 %v728, %v727
        %v739 = vpack.c.b16 %v730, %v729
        %v740 = vpack.c.b16 %v732, %v731
        %749 = vmatprep.subr.bf16.mxu0 0
        %750 = vmatpush1.bf16.msra.mxu0 %v733
        %751 = vmatprep.subr.bf16.mxu0 0
        %752 = vmatpush1.bf16.msra.mxu0 %v734
        %753 = vmatprep.subr.bf16.mxu0 0
        %754 = vmatpush1.bf16.msra.mxu0 %v735
        %755 = vmatprep.subr.bf16.mxu0 0
        %756 = vmatpush1.bf16.msra.mxu0 %v736
        %757 = vmatprep.subr.bf16.mxu0 0
        %758 = vmatpush1.bf16.msra.mxu0 %v737
        %759 = vmatprep.subr.bf16.mxu0 0
        %760 = vmatpush1.bf16.msra.mxu0 %v738
        %761 = vmatprep.subr.bf16.mxu0 0
        %762 = vmatpush1.bf16.msra.mxu0 %v739
        %763 = vmatprep.subr.bf16.mxu0 0
        %764 = vmatpush1.bf16.msra.mxu0 %v740
        %765 = vmatprep.subr.bf16.mxu0 0
        %766 = vmatpush1.bf16.msra.mxu0 0
        %767 = vmatprep.subr.bf16.mxu0 0
        %768 = vmatpush1.bf16.msra.mxu0 0
        %769 = vmatprep.subr.bf16.mxu0 0
        %770 = vmatpush1.bf16.msra.mxu0 0
        %771 = vmatprep.subr.bf16.mxu0 0
        %772 = vmatpush1.bf16.msra.mxu0 0
        %773 = vmatprep.subr.bf16.mxu0 0
        %774 = vmatpush1.bf16.msra.mxu0 0
        %775 = vmatprep.subr.bf16.mxu0 0
        %776 = vmatpush1.bf16.msra.mxu0 0
        %777 = vmatprep.subr.bf16.mxu0 0
        %778 = vmatpush1.bf16.msra.mxu0 0
        %779 = vmatprep.subr.bf16.mxu0 0
        %780 = vmatpush1.bf16.msra.mxu0 0
        %781 = vmatprep.mubr.bf16.mxu0 0
        %782 = vmatmul.mubr.bf16.gmra.mrb[0].mxu0 %v693
        %v783 = vpop.f32.mrb[0].mxu0
        %v784 = vadd.f32 %v647, %v783
        %v785 = vpop.f32.mrb[0].mxu0
        %v786 = vpop.f32.mrb[0].mxu0
        %v787 = vadd.f32 %v650, %v786
        %v788 = vpop.f32.mrb[0].mxu0
        %789 = vmatprep.mubr.bf16.mxu0 0
        %790 = vmatmul.mubr.bf16.gmra.mrb[0].mxu0 %v694
        %v791 = vpop.f32.mrb[0].mxu0
        %v792 = vadd.f32 %v655, %v791
        %v793 = vpop.f32.mrb[0].mxu0
        %v794 = vpop.f32.mrb[0].mxu0
        %v795 = vadd.f32 %v658, %v794
        %v796 = vpop.f32.mrb[0].mxu0
        %797 = vmatprep.mubr.bf16.mxu0 0
        %798 = vmatmul.mubr.bf16.gmra.mrb[0].mxu0 %v695
        %v799 = vpop.f32.mrb[0].mxu0
        %v800 = vadd.f32 %v663, %v799
        %v801 = vpop.f32.mrb[0].mxu0
        %v802 = vpop.f32.mrb[0].mxu0
        %v803 = vadd.f32 %v666, %v802
        %v804 = vpop.f32.mrb[0].mxu0
        %805 = vmatprep.mubr.bf16.mxu0 0
        %806 = vmatmul.mubr.bf16.gmra.mrb[0].mxu0 %v696
        %v807 = vpop.f32.mrb[0].mxu0
        %v808 = vadd.f32 %v671, %v807
        %v809 = vpop.f32.mrb[0].mxu0
        %v810 = vpop.f32.mrb[0].mxu0
        %v811 = vadd.f32 %v674, %v810
        %v812 = vpop.f32.mrb[0].mxu0
        %813 = vdwg.mxu0
        %v814 = vld [vmem:[%s4] sm:$0x1]
        %v816 = vlaneseq
        %v817 = vshrl.u32 %v816, 7
        %v818 = vsub.s32 0, %v817
        %v819 = vrot.slane %v814, %v818
        %v821 = vadd.f32 %v784, %v819
        %v822 = vadd.f32 %v787, %v819
        %v823 = vadd.f32 %v792, %v819
        %v824 = vadd.f32 %v795, %v819
        %v825 = vadd.f32 %v800, %v819
        %v826 = vadd.f32 %v803, %v819
        %v827 = vadd.f32 %v808, %v819
        %v828 = vadd.f32 %v811, %v819
        %v829 = vmul.f32 %v821, 0.5
        %v830 = vmul.f32 %v822, 0.5
        %v831 = vmul.f32 %v823, 0.5
        %v832 = vmul.f32 %v824, 0.5
        %v833 = vmul.f32 %v825, 0.5
        %v834 = vmul.f32 %v826, 0.5
        %v835 = vmul.f32 %v827, 0.5
        %v836 = vmul.f32 %v828, 0.5
        %v837 = vmul.f32 %v821, 0.70710677
        %v838 = vmul.f32 %v822, 0.70710677
        %v839 = vmul.f32 %v823, 0.70710677
        %v840 = vmul.f32 %v824, 0.70710677
        %v841 = vmul.f32 %v825, 0.70710677
        %v842 = vmul.f32 %v826, 0.70710677
        %v843 = vmul.f32 %v827, 0.70710677
        %v844 = vmul.f32 %v828, 0.70710677
        %v845 = verf.f32.pop %v837
        %v846 = verf.f32.pop %v838
        %v847 = verf.f32.pop %v839
        %v848 = verf.f32.pop %v840
        %v849 = verf.f32.pop %v841
        %v850 = verf.f32.pop %v842
        %v851 = verf.f32.pop %v843
        %v852 = verf.f32.pop %v844
        %v853 = vadd.f32 %v845, 1.0
        %v854 = vadd.f32 %v846, 1.0
        %v855 = vadd.f32 %v847, 1.0
        %v856 = vadd.f32 %v848, 1.0
        %v857 = vadd.f32 %v849, 1.0
        %v858 = vadd.f32 %v850, 1.0
        %v859 = vadd.f32 %v851, 1.0
        %v860 = vadd.f32 %v852, 1.0
        %v861 = vmul.f32 %v829, %v853
        %v862 = vmul.f32 %v830, %v854
        %v863 = vmul.f32 %v831, %v855
        %v864 = vmul.f32 %v832, %v856
        %v865 = vmul.f32 %v833, %v857
        %v866 = vmul.f32 %v834, %v858
        %v867 = vmul.f32 %v835, %v859
        %v868 = vmul.f32 %v836, %v860
        %v869 = vpack.c.bf16 %v862, %v861
        %v870 = vpack.c.bf16 %v864, %v863
        %v871 = vpack.c.bf16 %v866, %v865
        %v872 = vpack.c.bf16 %v868, %v867
        %v873 = vld [vmem:[#allocation10] sm:$0xf]
        %v874 = vld [vmem:[#allocation10 + $0x4] sm:$0xf]
        %v875 = vld [vmem:[#allocation10 + $0x8] sm:$0xf]
        %v876 = vld [vmem:[#allocation10 + $0xc] sm:$0xf]
        %v877 = vld [vmem:[#allocation10 + $0x10] sm:$0xf]
        %v878 = vld [vmem:[#allocation10 + $0x14] sm:$0xf]
        %v879 = vld [vmem:[#allocation10 + $0x18] sm:$0xf]
        %v880 = vld [vmem:[#allocation10 + $0x1c] sm:$0xf]
        %v881 = vld [vmem:[#allocation10 + $0x20] sm:$0xf]
        %v882 = vld [vmem:[#allocation10 + $0x24] sm:$0xf]
        %v883 = vld [vmem:[#allocation10 + $0x28] sm:$0xf]
        %v884 = vld [vmem:[#allocation10 + $0x2c] sm:$0xf]
        %v885 = vld [vmem:[#allocation10 + $0x30] sm:$0xf]
        %v886 = vld [vmem:[#allocation10 + $0x34] sm:$0xf]
        %v887 = vld [vmem:[#allocation10 + $0x38] sm:$0xf]
        %v888 = vld [vmem:[#allocation10 + $0x3c] sm:$0xf]
        %v889 = vld [vmem:[%s7] sm:$0x1]
        %v891 = vlaneseq
        %v892 = vshrl.u32 %v891, 7
        %v893 = vsub.s32 0, %v892
        %v894 = vrot.slane %v889, %v893
        %v912 = vunpack.c.l.b16 %v873
        %v913 = vunpack.c.l.b16 %v874
        %v914 = vunpack.c.l.b16 %v875
        %v915 = vunpack.c.l.b16 %v876
        %v916 = vunpack.c.l.b16 %v877
        %v917 = vunpack.c.l.b16 %v878
        %v918 = vunpack.c.l.b16 %v879
        %v919 = vunpack.c.l.b16 %v880
        %v920 = vunpack.c.l.b16 %v881
        %v921 = vunpack.c.l.b16 %v882
        %v922 = vunpack.c.l.b16 %v883
        %v923 = vunpack.c.l.b16 %v884
        %v924 = vunpack.c.l.b16 %v885
        %v925 = vunpack.c.l.b16 %v886
        %v926 = vunpack.c.l.b16 %v887
        %v927 = vunpack.c.l.b16 %v888
        %v928 = vpack.c.b16 %v913, %v912
        %v929 = vpack.c.b16 %v915, %v914
        %v930 = vpack.c.b16 %v917, %v916
        %v931 = vpack.c.b16 %v919, %v918
        %v932 = vpack.c.b16 %v921, %v920
        %v933 = vpack.c.b16 %v923, %v922
        %v934 = vpack.c.b16 %v925, %v924
        %v935 = vpack.c.b16 %v927, %v926
        %944 = vmatprep.subr.bf16.mxu0 0
        %945 = vmatpush1.bf16.msra.mxu0 %v928
        %946 = vmatprep.subr.bf16.mxu0 0
        %947 = vmatpush1.bf16.msra.mxu0 %v929
        %948 = vmatprep.subr.bf16.mxu0 0
        %949 = vmatpush1.bf16.msra.mxu0 %v930
        %950 = vmatprep.subr.bf16.mxu0 0
        %951 = vmatpush1.bf16.msra.mxu0 %v931
        %952 = vmatprep.subr.bf16.mxu0 0
        %953 = vmatpush1.bf16.msra.mxu0 %v932
        %954 = vmatprep.subr.bf16.mxu0 0
        %955 = vmatpush1.bf16.msra.mxu0 %v933
        %956 = vmatprep.subr.bf16.mxu0 0
        %957 = vmatpush1.bf16.msra.mxu0 %v934
        %958 = vmatprep.subr.bf16.mxu0 0
        %959 = vmatpush1.bf16.msra.mxu0 %v935
        %960 = vmatprep.subr.bf16.mxu0 0
        %961 = vmatpush1.bf16.msra.mxu0 0
        %962 = vmatprep.subr.bf16.mxu0 0
        %963 = vmatpush1.bf16.msra.mxu0 0
        %964 = vmatprep.subr.bf16.mxu0 0
        %965 = vmatpush1.bf16.msra.mxu0 0
        %966 = vmatprep.subr.bf16.mxu0 0
        %967 = vmatpush1.bf16.msra.mxu0 0
        %968 = vmatprep.subr.bf16.mxu0 0
        %969 = vmatpush1.bf16.msra.mxu0 0
        %970 = vmatprep.subr.bf16.mxu0 0
        %971 = vmatpush1.bf16.msra.mxu0 0
        %972 = vmatprep.subr.bf16.mxu0 0
        %973 = vmatpush1.bf16.msra.mxu0 0
        %974 = vmatprep.subr.bf16.mxu0 0
        %975 = vmatpush1.bf16.msra.mxu0 0
        %976 = vmatprep.mubr.bf16.mxu0 0
        %977 = vmatmul.mubr.bf16.gmra.mrb[0].mxu0 %v869
        %v978 = vpop.f32.mrb[0].mxu0
        %v979 = vadd.f32 %v894, %v978
        %v980 = vpop.f32.mrb[0].mxu0
        %v981 = vpop.f32.mrb[0].mxu0
        %v982 = vadd.f32 %v894, %v981
        %v983 = vpop.f32.mrb[0].mxu0
        %984 = vmatprep.mubr.bf16.mxu0 0
        %985 = vmatmul.mubr.bf16.gmra.mrb[0].mxu0 %v870
        %v986 = vpop.f32.mrb[0].mxu0
        %v987 = vadd.f32 %v894, %v986
        %v988 = vpop.f32.mrb[0].mxu0
        %v989 = vpop.f32.mrb[0].mxu0
        %v990 = vadd.f32 %v894, %v989
        %v991 = vpop.f32.mrb[0].mxu0
        %992 = vmatprep.mubr.bf16.mxu0 0
        %993 = vmatmul.mubr.bf16.gmra.mrb[0].mxu0 %v871
        %v994 = vpop.f32.mrb[0].mxu0
        %v995 = vadd.f32 %v894, %v994
        %v996 = vpop.f32.mrb[0].mxu0
        %v997 = vpop.f32.mrb[0].mxu0
        %v998 = vadd.f32 %v894, %v997
        %v999 = vpop.f32.mrb[0].mxu0
        %1000 = vmatprep.mubr.bf16.mxu0 0
        %1001 = vmatmul.mubr.bf16.gmra.mrb[0].mxu0 %v872
        %v1002 = vpop.f32.mrb[0].mxu0
        %v1003 = vadd.f32 %v894, %v1002
        %v1004 = vpop.f32.mrb[0].mxu0
        %v1005 = vpop.f32.mrb[0].mxu0
        %v1006 = vadd.f32 %v894, %v1005
        %v1007 = vpop.f32.mrb[0].mxu0
        %1008 = vdwg.mxu0
        %1009 = vst [vmem:[%s479] sm:$0xff] %v979
        %1010 = vst [vmem:[%s479 + $0x8] sm:$0xff] %v982
        %1011 = vst [vmem:[%s479 + $0x10] sm:$0xff] %v987
        %1012 = vst [vmem:[%s479 + $0x18] sm:$0xff] %v990
        %1013 = vst [vmem:[%s479 + $0x20] sm:$0xff] %v995
        %1014 = vst [vmem:[%s479 + $0x28] sm:$0xff] %v998
        %1015 = vst [vmem:[%s479 + $0x30] sm:$0xff] %v1003
        %1016 = vst [vmem:[%s479 + $0x38] sm:$0xff] %v1006
        %v1017 = vld [vmem:[#allocation11] sm:$0xf]
        %v1018 = vld [vmem:[#allocation11 + $0x4] sm:$0xf]
        %v1019 = vld [vmem:[#allocation11 + $0x8] sm:$0xf]
        %v1020 = vld [vmem:[#allocation11 + $0xc] sm:$0xf]
        %v1021 = vld [vmem:[#allocation11 + $0x10] sm:$0xf]
        %v1022 = vld [vmem:[#allocation11 + $0x14] sm:$0xf]
        %v1023 = vld [vmem:[#allocation11 + $0x18] sm:$0xf]
        %v1024 = vld [vmem:[#allocation11 + $0x1c] sm:$0xf]
        %v1025 = vld [vmem:[#allocation11 + $0x20] sm:$0xf]
        %v1026 = vld [vmem:[#allocation11 + $0x24] sm:$0xf]
        %v1027 = vld [vmem:[#allocation11 + $0x28] sm:$0xf]
        %v1028 = vld [vmem:[#allocation11 + $0x2c] sm:$0xf]
        %v1029 = vld [vmem:[#allocation11 + $0x30] sm:$0xf]
        %v1030 = vld [vmem:[#allocation11 + $0x34] sm:$0xf]
        %v1031 = vld [vmem:[#allocation11 + $0x38] sm:$0xf]
        %v1032 = vld [vmem:[#allocation11 + $0x3c] sm:$0xf]
        %v1033 = vld [vmem:[%s8] sm:$0x1]
        %v1035 = vlaneseq
        %v1036 = vshrl.u32 %v1035, 7
        %v1037 = vsub.s32 0, %v1036
        %v1038 = vrot.slane %v1033, %v1037
        %v1056 = vunpack.c.l.b16 %v1017
        %v1057 = vunpack.c.l.b16 %v1018
        %v1058 = vunpack.c.l.b16 %v1019
        %v1059 = vunpack.c.l.b16 %v1020
        %v1060 = vunpack.c.l.b16 %v1021
        %v1061 = vunpack.c.l.b16 %v1022
        %v1062 = vunpack.c.l.b16 %v1023
        %v1063 = vunpack.c.l.b16 %v1024
        %v1064 = vunpack.c.l.b16 %v1025
        %v1065 = vunpack.c.l.b16 %v1026
        %v1066 = vunpack.c.l.b16 %v1027
        %v1067 = vunpack.c.l.b16 %v1028
        %v1068 = vunpack.c.l.b16 %v1029
        %v1069 = vunpack.c.l.b16 %v1030
        %v1070 = vunpack.c.l.b16 %v1031
        %v1071 = vunpack.c.l.b16 %v1032
        %v1072 = vpack.c.b16 %v1057, %v1056
        %v1073 = vpack.c.b16 %v1059, %v1058
        %v1074 = vpack.c.b16 %v1061, %v1060
        %v1075 = vpack.c.b16 %v1063, %v1062
        %v1076 = vpack.c.b16 %v1065, %v1064
        %v1077 = vpack.c.b16 %v1067, %v1066
        %v1078 = vpack.c.b16 %v1069, %v1068
        %v1079 = vpack.c.b16 %v1071, %v1070
        %1088 = vmatprep.subr.bf16.mxu0 0
        %1089 = vmatpush1.bf16.msra.mxu0 %v1072
        %1090 = vmatprep.subr.bf16.mxu0 0
        %1091 = vmatpush1.bf16.msra.mxu0 %v1073
        %1092 = vmatprep.subr.bf16.mxu0 0
        %1093 = vmatpush1.bf16.msra.mxu0 %v1074
        %1094 = vmatprep.subr.bf16.mxu0 0
        %1095 = vmatpush1.bf16.msra.mxu0 %v1075
        %1096 = vmatprep.subr.bf16.mxu0 0
        %1097 = vmatpush1.bf16.msra.mxu0 %v1076
        %1098 = vmatprep.subr.bf16.mxu0 0
        %1099 = vmatpush1.bf16.msra.mxu0 %v1077
        %1100 = vmatprep.subr.bf16.mxu0 0
        %1101 = vmatpush1.bf16.msra.mxu0 %v1078
        %1102 = vmatprep.subr.bf16.mxu0 0
        %1103 = vmatpush1.bf16.msra.mxu0 %v1079
        %1104 = vmatprep.subr.bf16.mxu0 0
        %1105 = vmatpush1.bf16.msra.mxu0 0
        %1106 = vmatprep.subr.bf16.mxu0 0
        %1107 = vmatpush1.bf16.msra.mxu0 0
        %1108 = vmatprep.subr.bf16.mxu0 0
        %1109 = vmatpush1.bf16.msra.mxu0 0
        %1110 = vmatprep.subr.bf16.mxu0 0
        %1111 = vmatpush1.bf16.msra.mxu0 0
        %1112 = vmatprep.subr.bf16.mxu0 0
        %1113 = vmatpush1.bf16.msra.mxu0 0
        %1114 = vmatprep.subr.bf16.mxu0 0
        %1115 = vmatpush1.bf16.msra.mxu0 0
        %1116 = vmatprep.subr.bf16.mxu0 0
        %1117 = vmatpush1.bf16.msra.mxu0 0
        %1118 = vmatprep.subr.bf16.mxu0 0
        %1119 = vmatpush1.bf16.msra.mxu0 0
        %1120 = vmatprep.mubr.bf16.mxu0 0
        %1121 = vmatmul.mubr.bf16.gmra.mrb[0].mxu0 %v869
        %v1122 = vpop.f32.mrb[0].mxu0
        %v1123 = vadd.f32 %v1038, %v1122
        %v1124 = vpop.f32.mrb[0].mxu0
        %v1125 = vpop.f32.mrb[0].mxu0
        %v1126 = vadd.f32 %v1038, %v1125
        %v1127 = vpop.f32.mrb[0].mxu0
        %1128 = vmatprep.mubr.bf16.mxu0 0
        %1129 = vmatmul.mubr.bf16.gmra.mrb[0].mxu0 %v870
        %v1130 = vpop.f32.mrb[0].mxu0
        %v1131 = vadd.f32 %v1038, %v1130
        %v1132 = vpop.f32.mrb[0].mxu0
        %v1133 = vpop.f32.mrb[0].mxu0
        %v1134 = vadd.f32 %v1038, %v1133
        %v1135 = vpop.f32.mrb[0].mxu0
        %1136 = vmatprep.mubr.bf16.mxu0 0
        %1137 = vmatmul.mubr.bf16.gmra.mrb[0].mxu0 %v871
        %v1138 = vpop.f32.mrb[0].mxu0
        %v1139 = vadd.f32 %v1038, %v1138
        %v1140 = vpop.f32.mrb[0].mxu0
        %v1141 = vpop.f32.mrb[0].mxu0
        %v1142 = vadd.f32 %v1038, %v1141
        %v1143 = vpop.f32.mrb[0].mxu0
        %1144 = vmatprep.mubr.bf16.mxu0 0
        %1145 = vmatmul.mubr.bf16.gmra.mrb[0].mxu0 %v872
        %v1146 = vpop.f32.mrb[0].mxu0
        %v1147 = vadd.f32 %v1038, %v1146
        %v1148 = vpop.f32.mrb[0].mxu0
        %v1149 = vpop.f32.mrb[0].mxu0
        %v1150 = vadd.f32 %v1038, %v1149
        %v1151 = vpop.f32.mrb[0].mxu0
        %1152 = vdwg.mxu0
        %1153 = vst [vmem:[%s486] sm:$0xff] %v1123
        %1154 = vst [vmem:[%s486 + $0x8] sm:$0xff] %v1126
        %1155 = vst [vmem:[%s486 + $0x10] sm:$0xff] %v1131
        %1156 = vst [vmem:[%s486 + $0x18] sm:$0xff] %v1134
        %1157 = vst [vmem:[%s486 + $0x20] sm:$0xff] %v1139
        %1158 = vst [vmem:[%s486 + $0x28] sm:$0xff] %v1142
        %1159 = vst [vmem:[%s486 + $0x30] sm:$0xff] %v1147
        %1160 = vst [vmem:[%s486 + $0x38] sm:$0xff] %v1150
        %s1161 = sand.u32 %s243, 1
        %s1162 = scalar_lea.sflag [#allocation4], %s1161
        %s1163 = sand.u32 %s243, 1
        %s1164 = smul.addr %s1163, 64
        %s1165 = scalar_lea.vmem [#allocation13], %s1164
        %s1166 = sand.u32 %s269, 1
        %s1167 = scalar_lea.sflag [#allocation15], %s1166
        %s1168 = sand.u32 %s269, 1
        %s1169 = smul.addr %s1168, 64
        %s1170 = scalar_lea.vmem [#allocation14], %s1169
        // Predicated region
        $region81: #{tpu_custom_call.1} parent=55 // pred_check
          %p1171 = pneg %p253
        $region82: #{tpu_custom_call.1} parent=55 // pred_check_branch
          %1173 = sbr.rel (%p1171) target = $region84
        $region83: #{tpu_custom_call.1} parent=55 // pred_region
          %s1174 = smul.u32 8, %s36
          %s1176 = ssub.s32 1024, 1024
          %1177 = vsyncadd %s1162, %s1176
          %s1178 = smul.addr %s1174, 128
          %s1179 = scalar_lea.hbm %s9, %s1178
          %s1180 = sshll.u32 %s1165, 4
          %s1181 = int_to_ptr.vmem [resolvable:$true] %s1180
          %1186 = dma.vmem_to_hbm [thread:$0]  %s1181, 1024, %s1179, %s1162, 128, 128, 8
        $region84: #{tpu_custom_call.1} parent=55 // pred_fallthru
          _
        // Predicated region
        $region85: #{tpu_custom_call.1} parent=55 // pred_check
          %p1187 = pneg %p279
        $region86: #{tpu_custom_call.1} parent=55 // pred_check_branch
          %1189 = sbr.rel (%p1187) target = $region88
        $region87: #{tpu_custom_call.1} parent=55 // pred_region
          %s1190 = smul.u32 8, %s36
          %s1192 = ssub.s32 1024, 1024
          %1193 = vsyncadd %s1167, %s1192
          %s1194 = smul.addr %s1190, 128
          %s1195 = scalar_lea.hbm %s10, %s1194
          %s1196 = sshll.u32 %s1170, 4
          %s1197 = int_to_ptr.vmem [resolvable:$true] %s1196
          %1202 = dma.vmem_to_hbm [thread:$0]  %s1197, 1024, %s1195, %s1167, 128, 128, 8
        $region88: #{tpu_custom_call.1} parent=55 // pred_fallthru
          _
      $region56: #{tpu_custom_call.1} parent=5 // pred_fallthru
        _
      %p1203 = scmp.le.s32.totalorder 2, %s31
      // Predicated region
      $region89: #{tpu_custom_call.1} parent=5 // pred_check
        %p1204 = pneg %p1203
      $region90: #{tpu_custom_call.1} parent=5 // pred_check_branch
        %1206 = sbr.rel (%p1204) target = $region92
      $region91: #{tpu_custom_call.1} parent=5 // pred_region
        %s1207 = ssub.s32 %s31, 2
        // Predicated region
        $region93: #{tpu_custom_call.1} parent=91 // pred_check
          %p1208 = pneg %p259
        $region94: #{tpu_custom_call.1} parent=91 // pred_check_branch
          %1210 = sbr.rel (%p1208) target = $region96
        $region95: #{tpu_custom_call.1} parent=91 // pred_region
          %s1211 = sand.u32 %s244, 1
          %s1212 = scalar_lea.sflag [#allocation4], %s1211
          %s1213 = sand.u32 %s244, 1
          %s1214 = smul.addr %s1213, 64
          %s1215 = scalar_lea.vmem [#allocation13], %s1214
          %1216 = dma.done %s1212, 1024
        $region96: #{tpu_custom_call.1} parent=91 // pred_fallthru
          _
        // Predicated region
        $region97: #{tpu_custom_call.1} parent=91 // pred_check
          %p1217 = pneg %p285
        $region98: #{tpu_custom_call.1} parent=91 // pred_check_branch
          %1219 = sbr.rel (%p1217) target = $region100
        $region99: #{tpu_custom_call.1} parent=91 // pred_region
          %s1220 = sand.u32 %s270, 1
          %s1221 = scalar_lea.sflag [#allocation15], %s1220
          %s1222 = sand.u32 %s270, 1
          %s1223 = smul.addr %s1222, 64
          %s1224 = scalar_lea.vmem [#allocation14], %s1223
          %1225 = dma.done %s1221, 1024
        $region100: #{tpu_custom_call.1} parent=91 // pred_fallthru
          _
      $region92: #{tpu_custom_call.1} parent=5 // pred_fallthru
        _
    $region6: #{tpu_custom_call.1} parent=1 // loop_footer
      %s35 = sadd.s32 1, %s31
    $region7: #{tpu_custom_call.1} parent=1 // loop_footer_branch
      %30 = sbr.rel target = $region3
    $region8: #{tpu_custom_call.1} parent=1 // loop_exit
      _
    %1226 = vsyncpa [#allocation3], 1
    %s1227 = scalar_lea.sflag [#allocation3], 1
    %1228 = vsyncpa %s1227, 1
    %1229 = vsyncpa [#allocation6], 1
    %s1230 = scalar_lea.sflag [#allocation6], 1
    %1231 = vsyncpa %s1230, 1
    %1232 = vsyncpa [#allocation9], 1
    %1233 = vsyncpa [#allocation12], 1
    %1234 = vsyncpa [#allocation4], 1
    %s1235 = scalar_lea.sflag [#allocation4], 1
    %1236 = vsyncpa %s1235, 1
    %1237 = vsyncpa [#allocation15], 1
    %s1238 = scalar_lea.sflag [#allocation15], 1
    %1239 = vsyncpa %s1238, 1

// kernel: tpu_custom_call.1
$region0: #{tpu_custom_call.1}
  #allocation0 [shape = 'u32[]', space=smem, size = 0x4, offset = 0x4, fixed_abs, tag = 'smem constant byte address 0x4 - core index']
  #allocation1 [shape = 'u32[144,128]{1,0:T(1,128)}', space=vmem, size = 0x12000, scoped, tag = 'internal scratch']
  %s0 = inlined_call_operand.hbm [shape: bf16[128,128], index: 0, kind: input, shape index: {}]
  %s1 = inlined_call_operand.hbm [shape: bf16[128,128], index: 1, kind: input, shape index: {}]
  %s2 = inlined_call_operand.hbm [shape: bf16[128,128], index: 2, kind: input, shape index: {}]
  %s3 = inlined_call_operand.hbm [shape: bf16[128,128], index: 3, kind: input, shape index: {}]
  %s4 = inlined_call_operand.vmem [shape: f32[1,128], index: 4, kind: input, shape index: {}]
  %s5 = inlined_call_operand.hbm [shape: bf16[128,128], index: 5, kind: input, shape index: {}]
  %s6 = inlined_call_operand.hbm [shape: bf16[128,128], index: 6, kind: input, shape index: {}]
  %s7 = inlined_call_operand.vmem [shape: f32[1,128], index: 7, kind: input, shape index: {}]
  %s8 = inlined_call_operand.vmem [shape: f32[1,128], index: 8, kind: input, shape index: {}]
  %s9 = inlined_call_operand.hbm [shape: f32[128,128], index: 9, kind: output, shape index: {0}]
  %s10 = inlined_call_operand.hbm [shape: f32[128,128], index: 10, kind: output, shape index: {1}]
  %11 = xla_tuple %s9, %s10
  %s12 = sld [smem:[#allocation0]]
  $region101: #{tpu_custom_call.1} parent=0
    _
  %s14 = ssub.s32 1, %s12
  %s15 = scalar_select 0, %s14, %s12
  $region1: #{tpu_custom_call.1} parent=0
    #allocation2 [shape = 'u8[32768]{0}', space=vmem, size = 0x8000, scoped, tag = 'input window, operand 0']
    #allocation3 [shape = 's32[2]{0}', space=sflag, size = 0x8, scoped, tag = 'scoped memory for tpu_custom_call.1']
    #allocation4 [shape = 's32[2]{0}', space=sflag, size = 0x8, scoped, tag = 'scoped memory for tpu_custom_call.1']
    #allocation5 [shape = 'u8[32768]{0}', space=vmem, size = 0x8000, scoped, tag = 'input window, operand 1']
    #allocation6 [shape = 's32[2]{0}', space=sflag, size = 0x8, scoped, tag = 'scoped memory for tpu_custom_call.1']
    #allocation7 [shape = 'u8[32768]{0}', space=vmem, size = 0x8000, scoped, tag = 'input window, operand 2, single buffered']
    #allocation8 [shape = 'u8[32768]{0}', space=vmem, size = 0x8000, scoped, tag = 'input window, operand 3, single buffered']
    #allocation9 [shape = 's32[1]{0}', space=sflag, size = 0x4, scoped, tag = 'scoped memory for tpu_custom_call.1']
    #allocation10 [shape = 'u8[32768]{0}', space=vmem, size = 0x8000, scoped, tag = 'input window, operand 5, single buffered']
    #allocation11 [shape = 'u8[32768]{0}', space=vmem, size = 0x8000, scoped, tag = 'input window, operand 6, single buffered']
    #allocation12 [shape = 's32[1]{0}', space=sflag, size = 0x4, scoped, tag = 'scoped memory for tpu_custom_call.1']
    #allocation13 [shape = 'u8[65536]{0}', space=vmem, size = 0x10000, scoped, tag = 'output window, operand 0']
    #allocation14 [shape = 'u8[65536]{0}', space=vmem, size = 0x10000, scoped, tag = 'output window, operand 1']
    #allocation15 [shape = 's32[2]{0}', space=sflag, size = 0x8, scoped, tag = 'scoped memory for tpu_custom_call.1']
    %16 = vsyncpa [#allocation3], 0
    %s17 = scalar_lea.sflag [#allocation3], 1
    %18 = vsyncpa %s17, 0
    %19 = vsyncpa [#allocation6], 0
    %s20 = scalar_lea.sflag [#allocation6], 1
    %21 = vsyncpa %s20, 0
    %22 = vsyncpa [#allocation9], 0
    %23 = vsyncpa [#allocation12], 0
    %24 = vsyncpa [#allocation4], 0
    %s25 = scalar_lea.sflag [#allocation4], 1
    %26 = vsyncpa %s25, 0
    %27 = vsyncpa [#allocation15], 0
    %s28 = scalar_lea.sflag [#allocation15], 1
    %29 = vsyncpa %s28, 0
    loop: start=0, step=1, limit=4
    $region2: #{tpu_custom_call.1} parent=1 // loop_pre_header
      _
    $region3: #{tpu_custom_call.1} parent=1 // loop_header
      %s31 = sphi 0, %s35
      %p32 = scmp.ge.s32.totalorder %s31, 4
      %s41 = sphi 0, %s43
      %s44 = sphi 0, %s41
      %s45 = sphi 0, %s44
      %s61 = sphi 0, %s45
      %s67 = sphi 0, %s69
      %s70 = sphi 0, %s67
      %s71 = sphi 0, %s70
      %s87 = sphi 0, %s71
      %s91 = sphi 0, %s91
      %s93 = sphi 0, %s91
      %s94 = sphi 0, %s93
      %s108 = sphi 0, %s94
      %s112 = sphi 0, %s112
      %s114 = sphi 0, %s112
      %s115 = sphi 0, %s114
      %s129 = sphi 0, %s115
      %s133 = sphi 0, %s133
      %s135 = sphi 0, %s133
      %s136 = sphi 0, %s135
      %s150 = sphi 0, %s136
      %s154 = sphi 0, %s154
      %s156 = sphi 0, %s154
      %s157 = sphi 0, %s156
      %s171 = sphi 0, %s157
      %s175 = sphi 0, %s175
      %s177 = sphi 0, %s175
      %s178 = sphi 0, %s177
      %s192 = sphi 0, %s178
      %s196 = sphi 0, %s196
      %s198 = sphi 0, %s196
      %s199 = sphi 0, %s198
      %s213 = sphi 0, %s199
      %s217 = sphi 0, %s217
      %s219 = sphi 0, %s217
      %s220 = sphi 0, %s219
      %s234 = sphi 0, %s220
      %s240 = sphi 0, %s242
      %s243 = sphi 0, %s240
      %s244 = sphi 0, %s243
      %s260 = sphi 0, %s244
      %s266 = sphi 0, %s268
      %s269 = sphi 0, %s266
      %s270 = sphi 0, %s269
      %s286 = sphi 0, %s270
    $region4: #{tpu_custom_call.1} parent=1 // loop_header_branch
      %34 = sbr.rel (%p32) target = $region8
    $region5: #{tpu_custom_call.1} parent=1 // loop_body
      %s36 = ssub.s32 %s31, 1
      %s37 = ssub.s32 %s31, 2
      %s38 = sadd.s32 %s31, 1
      %s39 = ssub.s32 %s31, %s38
      %p40 = scmp.eq.s32.totalorder %s39, 0
      %s42 = sadd.s32 %s41, 1
      %s43 = scalar_select %p40, %s41, %s42
      %p46 = pneg %p40
      %p47 = scmp.eq.s32.totalorder %s31, 1
      %p48 = por %p46, %p47
      %p49 = scmp.ne.s32.totalorder %s41, %s44
      %p50 = scmp.eq.s32.totalorder %s31, 0
      %p51 = por %p49, %p50
      %p52 = scmp.ne.s32.totalorder %s41, %s44
      %p53 = scmp.eq.s32.totalorder %s36, 1
      %p54 = por %p52, %p53
      %p55 = scmp.ne.s32.totalorder %s44, %s45
      %p56 = scmp.eq.s32.totalorder %s36, 0
      %p57 = por %p55, %p56
      %p58 = scmp.ne.s32.totalorder %s44, %s45
      %p59 = scmp.eq.s32.totalorder %s37, 1
      %p60 = por %p58, %p59
      %p62 = scmp.ne.s32.totalorder %s45, %s61
      %p63 = scmp.eq.s32.totalorder %s37, 0
      %p64 = por %p62, %p63
      %s65 = ssub.s32 %s31, %s38
      %p66 = scmp.eq.s32.totalorder %s65, 0
      %s68 = sadd.s32 %s67, 1
      %s69 = scalar_select %p66, %s67, %s68
      %p72 = pneg %p66
      %p73 = scmp.eq.s32.totalorder %s31, 1
      %p74 = por %p72, %p73
      %p75 = scmp.ne.s32.totalorder %s67, %s70
      %p76 = scmp.eq.s32.totalorder %s31, 0
      %p77 = por %p75, %p76
      %p78 = scmp.ne.s32.totalorder %s67, %s70
      %p79 = scmp.eq.s32.totalorder %s36, 1
      %p80 = por %p78, %p79
      %p81 = scmp.ne.s32.totalorder %s70, %s71
      %p82 = scmp.eq.s32.totalorder %s36, 0
      %p83 = por %p81, %p82
      %p84 = scmp.ne.s32.totalorder %s70, %s71
      %p85 = scmp.eq.s32.totalorder %s37, 1
      %p86 = por %p84, %p85
      %p88 = scmp.ne.s32.totalorder %s71, %s87
      %p89 = scmp.eq.s32.totalorder %s37, 0
      %p90 = por %p88, %p89
      %s92 = sadd.s32 %s91, 1
      %p95 = scmp.eq.s32.totalorder %s31, 1
      %p96 = scmp.ne.s32.totalorder %s91, %s93
      %p97 = scmp.eq.s32.totalorder %s31, 0
      %p98 = por %p96, %p97
      %p99 = scmp.ne.s32.totalorder %s91, %s93
      %p100 = scmp.eq.s32.totalorder %s36, 1
      %p101 = por %p99, %p100
      %p102 = scmp.ne.s32.totalorder %s93, %s94
      %p103 = scmp.eq.s32.totalorder %s36, 0
      %p104 = por %p102, %p103
      %p105 = scmp.ne.s32.totalorder %s93, %s94
      %p106 = scmp.eq.s32.totalorder %s37, 1
      %p107 = por %p105, %p106
      %p109 = scmp.ne.s32.totalorder %s94, %s108
      %p110 = scmp.eq.s32.totalorder %s37, 0
      %p111 = por %p109, %p110
      %s113 = sadd.s32 %s112, 1
      %p116 = scmp.eq.s32.totalorder %s31, 1
      %p117 = scmp.ne.s32.totalorder %s112, %s114
      %p118 = scmp.eq.s32.totalorder %s31, 0
      %p119 = por %p117, %p118
      %p120 = scmp.ne.s32.totalorder %s112, %s114
      %p121 = scmp.eq.s32.totalorder %s36, 1
      %p122 = por %p120, %p121
      %p123 = scmp.ne.s32.totalorder %s114, %s115
      %p124 = scmp.eq.s32.totalorder %s36, 0
      %p125 = por %p123, %p124
      %p126 = scmp.ne.s32.totalorder %s114, %s115
      %p127 = scmp.eq.s32.totalorder %s37, 1
      %p128 = por %p126, %p127
      %p130 = scmp.ne.s32.totalorder %s115, %s129
      %p131 = scmp.eq.s32.totalorder %s37, 0
      %p132 = por %p130, %p131
      %s134 = sadd.s32 %s133, 1
      %p137 = scmp.eq.s32.totalorder %s31, 1
      %p138 = scmp.ne.s32.totalorder %s133, %s135
      %p139 = scmp.eq.s32.totalorder %s31, 0
      %p140 = por %p138, %p139
      %p141 = scmp.ne.s32.totalorder %s133, %s135
      %p142 = scmp.eq.s32.totalorder %s36, 1
      %p143 = por %p141, %p142
      %p144 = scmp.ne.s32.totalorder %s135, %s136
      %p145 = scmp.eq.s32.totalorder %s36, 0
      %p146 = por %p144, %p145
      %p147 = scmp.ne.s32.totalorder %s135, %s136
      %p148 = scmp.eq.s32.totalorder %s37, 1
      %p149 = por %p147, %p148
      %p151 = scmp.ne.s32.totalorder %s136, %s150
      %p152 = scmp.eq.s32.totalorder %s37, 0
      %p153 = por %p151, %p152
      %s155 = sadd.s32 %s154, 1
      %p158 = scmp.eq.s32.totalorder %s31, 1
      %p159 = scmp.ne.s32.totalorder %s154, %s156
      %p160 = scmp.eq.s32.totalorder %s31, 0
      %p161 = por %p159, %p160
      %p162 = scmp.ne.s32.totalorder %s154, %s156
      %p163 = scmp.eq.s32.totalorder %s36, 1
      %p164 = por %p162, %p163
      %p165 = scmp.ne.s32.totalorder %s156, %s157
      %p166 = scmp.eq.s32.totalorder %s36, 0
      %p167 = por %p165, %p166
      %p168 = scmp.ne.s32.totalorder %s156, %s157
      %p169 = scmp.eq.s32.totalorder %s37, 1
      %p170 = por %p168, %p169
      %p172 = scmp.ne.s32.totalorder %s157, %s171
      %p173 = scmp.eq.s32.totalorder %s37, 0
      %p174 = por %p172, %p173
      %s176 = sadd.s32 %s175, 1
      %p179 = scmp.eq.s32.totalorder %s31, 1
      %p180 = scmp.ne.s32.totalorder %s175, %s177
      %p181 = scmp.eq.s32.totalorder %s31, 0
      %p182 = por %p180, %p181
      %p183 = scmp.ne.s32.totalorder %s175, %s177
      %p184 = scmp.eq.s32.totalorder %s36, 1
      %p185 = por %p183, %p184
      %p186 = scmp.ne.s32.totalorder %s177, %s178
      %p187 = scmp.eq.s32.totalorder %s36, 0
      %p188 = por %p186, %p187
      %p189 = scmp.ne.s32.totalorder %s177, %s178
      %p190 = scmp.eq.s32.totalorder %s37, 1
      %p191 = por %p189, %p190
      %p193 = scmp.ne.s32.totalorder %s178, %s192
      %p194 = scmp.eq.s32.totalorder %s37, 0
      %p195 = por %p193, %p194
      %s197 = sadd.s32 %s196, 1
      %p200 = scmp.eq.s32.totalorder %s31, 1
      %p201 = scmp.ne.s32.totalorder %s196, %s198
      %p202 = scmp.eq.s32.totalorder %s31, 0
      %p203 = por %p201, %p202
      %p204 = scmp.ne.s32.totalorder %s196, %s198
      %p205 = scmp.eq.s32.totalorder %s36, 1
      %p206 = por %p204, %p205
      %p207 = scmp.ne.s32.totalorder %s198, %s199
      %p208 = scmp.eq.s32.totalorder %s36, 0
      %p209 = por %p207, %p208
      %p210 = scmp.ne.s32.totalorder %s198, %s199
      %p211 = scmp.eq.s32.totalorder %s37, 1
      %p212 = por %p210, %p211
      %p214 = scmp.ne.s32.totalorder %s199, %s213
      %p215 = scmp.eq.s32.totalorder %s37, 0
      %p216 = por %p214, %p215
      %s218 = sadd.s32 %s217, 1
      %p221 = scmp.eq.s32.totalorder %s31, 1
      %p222 = scmp.ne.s32.totalorder %s217, %s219
      %p223 = scmp.eq.s32.totalorder %s31, 0
      %p224 = por %p222, %p223
      %p225 = scmp.ne.s32.totalorder %s217, %s219
      %p226 = scmp.eq.s32.totalorder %s36, 1
      %p227 = por %p225, %p226
      %p228 = scmp.ne.s32.totalorder %s219, %s220
      %p229 = scmp.eq.s32.totalorder %s36, 0
      %p230 = por %p228, %p229
      %p231 = scmp.ne.s32.totalorder %s219, %s220
      %p232 = scmp.eq.s32.totalorder %s37, 1
      %p233 = por %p231, %p232
      %p235 = scmp.ne.s32.totalorder %s220, %s234
      %p236 = scmp.eq.s32.totalorder %s37, 0
      %p237 = por %p235, %p236
      %s238 = ssub.s32 %s31, %s38
      %p239 = scmp.eq.s32.totalorder %s238, 0
      %s241 = sadd.s32 %s240, 1
      %s242 = scalar_select %p239, %s240, %s241
      %p245 = pneg %p239
      %p246 = scmp.eq.s32.totalorder %s31, 1
      %p247 = por %p245, %p246
      %p248 = scmp.ne.s32.totalorder %s240, %s243
      %p249 = scmp.eq.s32.totalorder %s31, 0
      %p250 = por %p248, %p249
      %p251 = scmp.ne.s32.totalorder %s240, %s243
      %p252 = scmp.eq.s32.totalorder %s36, 1
      %p253 = por %p251, %p252
      %p254 = scmp.ne.s32.totalorder %s243, %s244
      %p255 = scmp.eq.s32.totalorder %s36, 0
      %p256 = por %p254, %p255
      %p257 = scmp.ne.s32.totalorder %s243, %s244
      %p258 = scmp.eq.s32.totalorder %s37, 1
      %p259 = por %p257, %p258
      %p261 = scmp.ne.s32.totalorder %s244, %s260
      %p262 = scmp.eq.s32.totalorder %s37, 0
      %p263 = por %p261, %p262
      %s264 = ssub.s32 %s31, %s38
      %p265 = scmp.eq.s32.totalorder %s264, 0
      %s267 = sadd.s32 %s266, 1
      %s268 = scalar_select %p265, %s266, %s267
      %p271 = pneg %p265
      %p272 = scmp.eq.s32.totalorder %s31, 1
      %p273 = por %p271, %p272
      %p274 = scmp.ne.s32.totalorder %s266, %s269
      %p275 = scmp.eq.s32.totalorder %s31, 0
      %p276 = por %p274, %p275
      %p277 = scmp.ne.s32.totalorder %s266, %s269
      %p278 = scmp.eq.s32.totalorder %s36, 1
      %p279 = por %p277, %p278
      %p280 = scmp.ne.s32.totalorder %s269, %s270
      %p281 = scmp.eq.s32.totalorder %s36, 0
      %p282 = por %p280, %p281
      %p283 = scmp.ne.s32.totalorder %s269, %s270
      %p284 = scmp.eq.s32.totalorder %s37, 1
      %p285 = por %p283, %p284
      %p287 = scmp.ne.s32.totalorder %s270, %s286
      %p288 = scmp.eq.s32.totalorder %s37, 0
      %p289 = por %p287, %p288
      %p290 = scmp.le.s32.totalorder 1, %s31
      %p291 = scmp.lt.s32.totalorder %s31, 3
      %p292 = pnand %p290, %p291
      %p293 = pneg %p292
      // Predicated region
      $region9: #{tpu_custom_call.1} parent=5 // pred_check
        _
      $region10: #{tpu_custom_call.1} parent=5 // pred_check_branch
        %295 = sbr.rel (%p292) target = $region12
      $region11: #{tpu_custom_call.1} parent=5 // pred_region
        %s296 = ssub.s32 %s31, 1
        // Predicated region
        $region13: #{tpu_custom_call.1} parent=11 // pred_check
          %p297 = pneg %p104
        $region14: #{tpu_custom_call.1} parent=11 // pred_check_branch
          %299 = sbr.rel (%p297) target = $region16
        $region15: #{tpu_custom_call.1} parent=11 // pred_region
          %s301 = ssub.s32 1024, 1024
          %302 = vsyncadd [#allocation6], %s301
          %s303 = sshll.u32 [#allocation7], 4
          %s304 = int_to_ptr.vmem [resolvable:$true] %s303
          %309 = dma.hbm_to_vmem [thread:$0]  %s2, 1024, %s304, [#allocation6], 64, 64, 4
        $region16: #{tpu_custom_call.1} parent=11 // pred_fallthru
          _
        // Predicated region
        $region17: #{tpu_custom_call.1} parent=11 // pred_check
          %p310 = pneg %p125
        $region18: #{tpu_custom_call.1} parent=11 // pred_check_branch
          %312 = sbr.rel (%p310) target = $region20
        $region19: #{tpu_custom_call.1} parent=11 // pred_region
          %s314 = ssub.s32 1024, 1024
          %315 = vsyncadd [#allocation9], %s314
          %s316 = sshll.u32 [#allocation8], 4
          %s317 = int_to_ptr.vmem [resolvable:$true] %s316
          %322 = dma.hbm_to_vmem [thread:$0]  %s3, 1024, %s317, [#allocation9], 64, 64, 4
        $region20: #{tpu_custom_call.1} parent=11 // pred_fallthru
          _
        // Predicated region
        $region21: #{tpu_custom_call.1} parent=11 // pred_check
          %p323 = pneg %p146
        $region22: #{tpu_custom_call.1} parent=11 // pred_check_branch
          %325 = sbr.rel (%p323) target = $region24
        $region23: #{tpu_custom_call.1} parent=11 // pred_region
          _
        $region24: #{tpu_custom_call.1} parent=11 // pred_fallthru
          _
        // Predicated region
        $region25: #{tpu_custom_call.1} parent=11 // pred_check
          %p326 = pneg %p167
        $region26: #{tpu_custom_call.1} parent=11 // pred_check_branch
          %328 = sbr.rel (%p326) target = $region28
        $region27: #{tpu_custom_call.1} parent=11 // pred_region
          %s330 = ssub.s32 1024, 1024
          %331 = vsyncadd [#allocation9], %s330
          %s332 = sshll.u32 [#allocation10], 4
          %s333 = int_to_ptr.vmem [resolvable:$true] %s332
          %338 = dma.hbm_to_vmem [thread:$0]  %s5, 1024, %s333, [#allocation9], 64, 64, 4
        $region28: #{tpu_custom_call.1} parent=11 // pred_fallthru
          _
        // Predicated region
        $region29: #{tpu_custom_call.1} parent=11 // pred_check
          %p339 = pneg %p188
        $region30: #{tpu_custom_call.1} parent=11 // pred_check_branch
          %341 = sbr.rel (%p339) target = $region32
        $region31: #{tpu_custom_call.1} parent=11 // pred_region
          %s343 = ssub.s32 1024, 1024
          %344 = vsyncadd [#allocation12], %s343
          %s345 = sshll.u32 [#allocation11], 4
          %s346 = int_to_ptr.vmem [resolvable:$true] %s345
          %351 = dma.hbm_to_vmem [thread:$0]  %s6, 1024, %s346, [#allocation12], 64, 64, 4
        $region32: #{tpu_custom_call.1} parent=11 // pred_fallthru
          _
        // Predicated region
        $region33: #{tpu_custom_call.1} parent=11 // pred_check
          %p352 = pneg %p209
        $region34: #{tpu_custom_call.1} parent=11 // pred_check_branch
          %354 = sbr.rel (%p352) target = $region36
        $region35: #{tpu_custom_call.1} parent=11 // pred_region
          _
        $region36: #{tpu_custom_call.1} parent=11 // pred_fallthru
          _
        // Predicated region
        $region37: #{tpu_custom_call.1} parent=11 // pred_check
          %p355 = pneg %p230
        $region38: #{tpu_custom_call.1} parent=11 // pred_check_branch
          %357 = sbr.rel (%p355) target = $region40
        $region39: #{tpu_custom_call.1} parent=11 // pred_region
          _
        $region40: #{tpu_custom_call.1} parent=11 // pred_fallthru
          _
      $region12: #{tpu_custom_call.1} parent=5 // pred_fallthru
        _
      %p358 = scmp.lt.s32.totalorder %s31, 2
      // Predicated region
      $region41: #{tpu_custom_call.1} parent=5 // pred_check
        %p359 = pneg %p358
      $region42: #{tpu_custom_call.1} parent=5 // pred_check_branch
        %361 = sbr.rel (%p359) target = $region44
      $region43: #{tpu_custom_call.1} parent=5 // pred_region
        // Predicated region
        $region45: #{tpu_custom_call.1} parent=43 // pred_check
          %p362 = pneg %p51
        $region46: #{tpu_custom_call.1} parent=43 // pred_check_branch
          %364 = sbr.rel (%p362) target = $region48
        $region47: #{tpu_custom_call.1} parent=43 // pred_region
          %s365 = sand.u32 %s41, 1
          %s366 = scalar_lea.sflag [#allocation3], %s365
          %s367 = sand.u32 %s41, 1
          %s368 = smul.addr %s367, 32
          %s369 = scalar_lea.vmem [#allocation2], %s368
          %s370 = smul.u32 8, %s31
          %s372 = ssub.s32 512, 512
          %373 = vsyncadd %s366, %s372
          %s374 = smul.addr %s370, 64
          %s375 = scalar_lea.hbm %s0, %s374
          %s376 = sshll.u32 %s369, 4
          %s377 = int_to_ptr.vmem [resolvable:$true] %s376
          %382 = dma.hbm_to_vmem [thread:$0]  %s375, 512, %s377, %s366, 64, 64, 4
        $region48: #{tpu_custom_call.1} parent=43 // pred_fallthru
          _
        // Predicated region
        $region49: #{tpu_custom_call.1} parent=43 // pred_check
          %p383 = pneg %p77
        $region50: #{tpu_custom_call.1} parent=43 // pred_check_branch
          %385 = sbr.rel (%p383) target = $region52
        $region51: #{tpu_custom_call.1} parent=43 // pred_region
          %s386 = sand.u32 %s31, 1
          %s387 = scalar_lea.sflag [#allocation6], %s386
          %s388 = sand.u32 %s67, 1
          %s389 = smul.addr %s388, 32
          %s390 = scalar_lea.vmem [#allocation5], %s389
          %s391 = smul.u32 8, %s31
          %s393 = ssub.s32 512, 512
          %394 = vsyncadd %s387, %s393
          %s395 = smul.addr %s391, 64
          %s396 = scalar_lea.hbm %s1, %s395
          %s397 = sshll.u32 %s390, 4
          %s398 = int_to_ptr.vmem [resolvable:$true] %s397
          %403 = dma.hbm_to_vmem [thread:$0]  %s396, 512, %s398, %s387, 64, 64, 4
        $region52: #{tpu_custom_call.1} parent=43 // pred_fallthru
          _
      $region44: #{tpu_custom_call.1} parent=5 // pred_fallthru
        _
      %p404 = scmp.le.s32.totalorder 1, %s31
      %p405 = scmp.lt.s32.totalorder %s31, 3
      %p406 = pnand %p404, %p405
      %p407 = pneg %p406
      // Predicated region
      $region53: #{tpu_custom_call.1} parent=5 // pred_check
        _
      $region54: #{tpu_custom_call.1} parent=5 // pred_check_branch
        %409 = sbr.rel (%p406) target = $region56
      $region55: #{tpu_custom_call.1} parent=5 // pred_region
        %s410 = ssub.s32 %s31, 1
        %s411 = sand.u32 %s44, 1
        %s412 = scalar_lea.sflag [#allocation3], %s411
        %s413 = sand.u32 %s44, 1
        %s414 = smul.addr %s413, 32
        %s415 = scalar_lea.vmem [#allocation2], %s414
        // Predicated region
        $region57: #{tpu_custom_call.1} parent=55 // pred_check
          %p416 = pneg %p57
        $region58: #{tpu_custom_call.1} parent=55 // pred_check_branch
          %418 = sbr.rel (%p416) target = $region60
        $region59: #{tpu_custom_call.1} parent=55 // pred_region
          %419 = dma.done %s412, 512
        $region60: #{tpu_custom_call.1} parent=55 // pred_fallthru
          _
        %s420 = sand.u32 %s36, 1
        %s421 = scalar_lea.sflag [#allocation6], %s420
        %s422 = sand.u32 %s70, 1
        %s423 = smul.addr %s422, 32
        %s424 = scalar_lea.vmem [#allocation5], %s423
        // Predicated region
        $region61: #{tpu_custom_call.1} parent=55 // pred_check
          %p425 = pneg %p83
        $region62: #{tpu_custom_call.1} parent=55 // pred_check_branch
          %427 = sbr.rel (%p425) target = $region64
        $region63: #{tpu_custom_call.1} parent=55 // pred_region
          %428 = dma.done %s421, 512
        $region64: #{tpu_custom_call.1} parent=55 // pred_fallthru
          _
        // Predicated region
        $region65: #{tpu_custom_call.1} parent=55 // pred_check
          %p429 = pneg %p104
        $region66: #{tpu_custom_call.1} parent=55 // pred_check_branch
          %431 = sbr.rel (%p429) target = $region68
        $region67: #{tpu_custom_call.1} parent=55 // pred_region
          %432 = dma.done [#allocation6], 1024
        $region68: #{tpu_custom_call.1} parent=55 // pred_fallthru
          _
        // Predicated region
        $region69: #{tpu_custom_call.1} parent=55 // pred_check
          %p433 = pneg %p125
        $region70: #{tpu_custom_call.1} parent=55 // pred_check_branch
          %435 = sbr.rel (%p433) target = $region72
        $region71: #{tpu_custom_call.1} parent=55 // pred_region
          %436 = dma.done [#allocation9], 1024
        $region72: #{tpu_custom_call.1} parent=55 // pred_fallthru
          _
        // Predicated region
        $region73: #{tpu_custom_call.1} parent=55 // pred_check
          %p437 = pneg %p167
        $region74: #{tpu_custom_call.1} parent=55 // pred_check_branch
          %439 = sbr.rel (%p437) target = $region76
        $region75: #{tpu_custom_call.1} parent=55 // pred_region
          %440 = dma.done [#allocation9], 1024
        $region76: #{tpu_custom_call.1} parent=55 // pred_fallthru
          _
        // Predicated region
        $region77: #{tpu_custom_call.1} parent=55 // pred_check
          %p441 = pneg %p188
        $region78: #{tpu_custom_call.1} parent=55 // pred_check_branch
          %443 = sbr.rel (%p441) target = $region80
        $region79: #{tpu_custom_call.1} parent=55 // pred_region
          %444 = dma.done [#allocation12], 1024
        $region80: #{tpu_custom_call.1} parent=55 // pred_fallthru
          _
        %s445 = sand.u32 %s44, 1
        %s446 = scalar_lea.sflag [#allocation3], %s445
        %s447 = sand.u32 %s44, 1
        %s448 = smul.addr %s447, 32
        %s449 = scalar_lea.vmem [#allocation2], %s448
        %p450 = pneg %p57
        %p451 = pneg %p54
        %s452 = sand.u32 %s36, 1
        %s453 = scalar_lea.sflag [#allocation6], %s452
        %s454 = sand.u32 %s70, 1
        %s455 = smul.addr %s454, 32
        %s456 = scalar_lea.vmem [#allocation5], %s455
        %p457 = pneg %p83
        %p458 = pneg %p80
        %p459 = pneg %p104
        %p460 = pneg %p101
        %p461 = pneg %p125
        %p462 = pneg %p122
        %p463 = pneg %p146
        %p464 = pneg %p143
        %p465 = pneg %p167
        %p466 = pneg %p164
        %p467 = pneg %p188
        %p468 = pneg %p185
        %p469 = pneg %p209
        %p470 = pneg %p206
        %p471 = pneg %p230
        %p472 = pneg %p227
        %p473 = pneg %p256
        %p474 = pneg %p253
        %s475 = sand.u32 %s243, 1
        %s476 = scalar_lea.sflag [#allocation4], %s475
        %s477 = sand.u32 %s243, 1
        %s478 = smul.addr %s477, 64
        %s479 = scalar_lea.vmem [#allocation13], %s478
        %p480 = pneg %p282
        %p481 = pneg %p279
        %s482 = sand.u32 %s269, 1
        %s483 = scalar_lea.sflag [#allocation15], %s482
        %s484 = sand.u32 %s269, 1
        %s485 = smul.addr %s484, 64
        %s486 = scalar_lea.vmem [#allocation14], %s485
        %s487 = smul.u32 8, %s36
        %s488 = smul.u32 8, %s36
        %s489 = smul.u32 8, %s36
        %s490 = smul.u32 8, %s36
        %v492 = vld [vmem:[%s415] sm:$0xf]
        %v493 = vld [vmem:[%s415 + $0x4] sm:$0xf]
        %v494 = vld [vmem:[%s415 + $0x8] sm:$0xf]
        %v495 = vld [vmem:[%s415 + $0xc] sm:$0xf]
        %v496 = vld [vmem:[%s415 + $0x10] sm:$0xf]
        %v497 = vld [vmem:[%s415 + $0x14] sm:$0xf]
        %v498 = vld [vmem:[%s415 + $0x18] sm:$0xf]
        %v499 = vld [vmem:[%s415 + $0x1c] sm:$0xf]
        %v500 = vld [vmem:[%s424] sm:$0xf]
        %v501 = vld [vmem:[%s424 + $0x4] sm:$0xf]
        %v502 = vld [vmem:[%s424 + $0x8] sm:$0xf]
        %v503 = vld [vmem:[%s424 + $0xc] sm:$0xf]
        %v504 = vld [vmem:[%s424 + $0x10] sm:$0xf]
        %v505 = vld [vmem:[%s424 + $0x14] sm:$0xf]
        %v506 = vld [vmem:[%s424 + $0x18] sm:$0xf]
        %v507 = vld [vmem:[%s424 + $0x1c] sm:$0xf]
        %v508 = vld [vmem:[#allocation7] sm:$0xf]
        %v509 = vld [vmem:[#allocation7 + $0x4] sm:$0xf]
        %v510 = vld [vmem:[#allocation7 + $0x8] sm:$0xf]
        %v511 = vld [vmem:[#allocation7 + $0xc] sm:$0xf]
        %v512 = vld [vmem:[#allocation7 + $0x10] sm:$0xf]
        %v513 = vld [vmem:[#allocation7 + $0x14] sm:$0xf]
        %v514 = vld [vmem:[#allocation7 + $0x18] sm:$0xf]
        %v515 = vld [vmem:[#allocation7 + $0x1c] sm:$0xf]
        %v516 = vld [vmem:[#allocation7 + $0x20] sm:$0xf]
        %v517 = vld [vmem:[#allocation7 + $0x24] sm:$0xf]
        %v518 = vld [vmem:[#allocation7 + $0x28] sm:$0xf]
        %v519 = vld [vmem:[#allocation7 + $0x2c] sm:$0xf]
        %v520 = vld [vmem:[#allocation7 + $0x30] sm:$0xf]
        %v521 = vld [vmem:[#allocation7 + $0x34] sm:$0xf]
        %v522 = vld [vmem:[#allocation7 + $0x38] sm:$0xf]
        %v523 = vld [vmem:[#allocation7 + $0x3c] sm:$0xf]
        %v524 = vld [vmem:[#allocation8] sm:$0xf]
        %v525 = vld [vmem:[#allocation8 + $0x4] sm:$0xf]
        %v526 = vld [vmem:[#allocation8 + $0x8] sm:$0xf]
        %v527 = vld [vmem:[#allocation8 + $0xc] sm:$0xf]
        %v528 = vld [vmem:[#allocation8 + $0x10] sm:$0xf]
        %v529 = vld [vmem:[#allocation8 + $0x14] sm:$0xf]
        %v530 = vld [vmem:[#allocation8 + $0x18] sm:$0xf]
        %v531 = vld [vmem:[#allocation8 + $0x1c] sm:$0xf]
        %v532 = vld [vmem:[#allocation8 + $0x20] sm:$0xf]
        %v533 = vld [vmem:[#allocation8 + $0x24] sm:$0xf]
        %v534 = vld [vmem:[#allocation8 + $0x28] sm:$0xf]
        %v535 = vld [vmem:[#allocation8 + $0x2c] sm:$0xf]
        %v536 = vld [vmem:[#allocation8 + $0x30] sm:$0xf]
        %v537 = vld [vmem:[#allocation8 + $0x34] sm:$0xf]
        %v538 = vld [vmem:[#allocation8 + $0x38] sm:$0xf]
        %v539 = vld [vmem:[#allocation8 + $0x3c] sm:$0xf]
        %v548 = vunpack.c.l.b16 %v500
        %v549 = vunpack.c.l.b16 %v501
        %v550 = vunpack.c.l.b16 %v502
        %v551 = vunpack.c.l.b16 %v503
        %v552 = vunpack.c.l.b16 %v504
        %v553 = vunpack.c.l.b16 %v505
        %v554 = vunpack.c.l.b16 %v506
        %v555 = vunpack.c.l.b16 %v507
        %v556 = vpack.c.b16 %v549, %v548
        %v557 = vpack.c.b16 %v551, %v550
        %v558 = vpack.c.b16 %v553, %v552
        %v559 = vpack.c.b16 %v555, %v554
        %v580 = vunpack.c.l.b16 %v524
        %v581 = vunpack.c.l.b16 %v525
        %v582 = vunpack.c.l.b16 %v526
        %v583 = vunpack.c.l.b16 %v527
        %v584 = vunpack.c.l.b16 %v528
        %v585 = vunpack.c.l.b16 %v529
        %v586 = vunpack.c.l.b16 %v530
        %v587 = vunpack.c.l.b16 %v531
        %v588 = vunpack.c.l.b16 %v532
        %v589 = vunpack.c.l.b16 %v533
        %v590 = vunpack.c.l.b16 %v534
        %v591 = vunpack.c.l.b16 %v535
        %v592 = vunpack.c.l.b16 %v536
        %v593 = vunpack.c.l.b16 %v537
        %v594 = vunpack.c.l.b16 %v538
        %v595 = vunpack.c.l.b16 %v539
        %v596 = vpack.c.b16 %v581, %v580
        %v597 = vpack.c.b16 %v583, %v582
        %v598 = vpack.c.b16 %v585, %v584
        %v599 = vpack.c.b16 %v587, %v586
        %v600 = vpack.c.b16 %v589, %v588
        %v601 = vpack.c.b16 %v591, %v590
        %v602 = vpack.c.b16 %v593, %v592
        %v603 = vpack.c.b16 %v595, %v594
        %612 = vmatprep.subr.bf16.mxu0 0
        %613 = vmatpush1.bf16.msra.mxu0 %v596
        %614 = vmatprep.subr.bf16.mxu0 0
        %615 = vmatpush1.bf16.msra.mxu0 %v597
        %616 = vmatprep.subr.bf16.mxu0 0
        %617 = vmatpush1.bf16.msra.mxu0 %v598
        %618 = vmatprep.subr.bf16.mxu0 0
        %619 = vmatpush1.bf16.msra.mxu0 %v599
        %620 = vmatprep.subr.bf16.mxu0 0
        %621 = vmatpush1.bf16.msra.mxu0 %v600
        %622 = vmatprep.subr.bf16.mxu0 0
        %623 = vmatpush1.bf16.msra.mxu0 %v601
        %624 = vmatprep.subr.bf16.mxu0 0
        %625 = vmatpush1.bf16.msra.mxu0 %v602
        %626 = vmatprep.subr.bf16.mxu0 0
        %627 = vmatpush1.bf16.msra.mxu0 %v603
        %628 = vmatprep.subr.bf16.mxu0 0
        %629 = vmatpush1.bf16.msra.mxu0 0
        %630 = vmatprep.subr.bf16.mxu0 0
        %631 = vmatpush1.bf16.msra.mxu0 0
        %632 = vmatprep.subr.bf16.mxu0 0
        %633 = vmatpush1.bf16.msra.mxu0 0
        %634 = vmatprep.subr.bf16.mxu0 0
        %635 = vmatpush1.bf16.msra.mxu0 0
        %636 = vmatprep.subr.bf16.mxu0 0
        %637 = vmatpush1.bf16.msra.mxu0 0
        %638 = vmatprep.subr.bf16.mxu0 0
        %639 = vmatpush1.bf16.msra.mxu0 0
        %640 = vmatprep.subr.bf16.mxu0 0
        %641 = vmatpush1.bf16.msra.mxu0 0
        %642 = vmatprep.subr.bf16.mxu0 0
        %643 = vmatpush1.bf16.msra.mxu0 0
        %644 = vmatprep.mubr.bf16.mxu0 0
        %645 = vmatmul.mubr.bf16.gmra.mrb[0].mxu0 %v556
        %v646 = vpop.f32.mrb[0].mxu0
        %v647 = vadd.f32 0.0, %v646
        %v648 = vpop.f32.mrb[0].mxu0
        %v649 = vpop.f32.mrb[0].mxu0
        %v650 = vadd.f32 0.0, %v649
        %v651 = vpop.f32.mrb[0].mxu0
        %652 = vmatprep.mubr.bf16.mxu0 0
        %653 = vmatmul.mubr.bf16.gmra.mrb[0].mxu0 %v557
        %v654 = vpop.f32.mrb[0].mxu0
        %v655 = vadd.f32 0.0, %v654
        %v656 = vpop.f32.mrb[0].mxu0
        %v657 = vpop.f32.mrb[0].mxu0
        %v658 = vadd.f32 0.0, %v657
        %v659 = vpop.f32.mrb[0].mxu0
        %660 = vmatprep.mubr.bf16.mxu0 0
        %661 = vmatmul.mubr.bf16.gmra.mrb[0].mxu0 %v558
        %v662 = vpop.f32.mrb[0].mxu0
        %v663 = vadd.f32 0.0, %v662
        %v664 = vpop.f32.mrb[0].mxu0
        %v665 = vpop.f32.mrb[0].mxu0
        %v666 = vadd.f32 0.0, %v665
        %v667 = vpop.f32.mrb[0].mxu0
        %668 = vmatprep.mubr.bf16.mxu0 0
        %669 = vmatmul.mubr.bf16.gmra.mrb[0].mxu0 %v559
        %v670 = vpop.f32.mrb[0].mxu0
        %v671 = vadd.f32 0.0, %v670
        %v672 = vpop.f32.mrb[0].mxu0
        %v673 = vpop.f32.mrb[0].mxu0
        %v674 = vadd.f32 0.0, %v673
        %v675 = vpop.f32.mrb[0].mxu0
        %676 = vdwg.mxu0
        %v685 = vunpack.c.l.b16 %v492
        %v686 = vunpack.c.l.b16 %v493
        %v687 = vunpack.c.l.b16 %v494
        %v688 = vunpack.c.l.b16 %v495
        %v689 = vunpack.c.l.b16 %v496
        %v690 = vunpack.c.l.b16 %v497
        %v691 = vunpack.c.l.b16 %v498
        %v692 = vunpack.c.l.b16 %v499
        %v693 = vpack.c.b16 %v686, %v685
        %v694 = vpack.c.b16 %v688, %v687
        %v695 = vpack.c.b16 %v690, %v689
        %v696 = vpack.c.b16 %v692, %v691
        %v717 = vunpack.c.l.b16 %v508
        %v718 = vunpack.c.l.b16 %v509
        %v719 = vunpack.c.l.b16 %v510
        %v720 = vunpack.c.l.b16 %v511
        %v721 = vunpack.c.l.b16 %v512
        %v722 = vunpack.c.l.b16 %v513
        %v723 = vunpack.c.l.b16 %v514
        %v724 = vunpack.c.l.b16 %v515
        %v725 = vunpack.c.l.b16 %v516
        %v726 = vunpack.c.l.b16 %v517
        %v727 = vunpack.c.l.b16 %v518
        %v728 = vunpack.c.l.b16 %v519
        %v729 = vunpack.c.l.b16 %v520
        %v730 = vunpack.c.l.b16 %v521
        %v731 = vunpack.c.l.b16 %v522
        %v732 = vunpack.c.l.b16 %v523
        %v733 = vpack.c.b16 %v718, %v717
        %v734 = vpack.c.b16 %v720, %v719
        %v735 = vpack.c.b16 %v722, %v721
        %v736 = vpack.c.b16 %v724, %v723
        %v737 = vpack.c.b16 %v726, %v725
        %v738 = vpack.c.b16 %v728, %v727
        %v739 = vpack.c.b16 %v730, %v729
        %v740 = vpack.c.b16 %v732, %v731
        %749 = vmatprep.subr.bf16.mxu0 0
        %750 = vmatpush1.bf16.msra.mxu0 %v733
        %751 = vmatprep.subr.bf16.mxu0 0
        %752 = vmatpush1.bf16.msra.mxu0 %v734
        %753 = vmatprep.subr.bf16.mxu0 0
        %754 = vmatpush1.bf16.msra.mxu0 %v735
        %755 = vmatprep.subr.bf16.mxu0 0
        %756 = vmatpush1.bf16.msra.mxu0 %v736
        %757 = vmatprep.subr.bf16.mxu0 0
        %758 = vmatpush1.bf16.msra.mxu0 %v737
        %759 = vmatprep.subr.bf16.mxu0 0
        %760 = vmatpush1.bf16.msra.mxu0 %v738
        %761 = vmatprep.subr.bf16.mxu0 0
        %762 = vmatpush1.bf16.msra.mxu0 %v739
        %763 = vmatprep.subr.bf16.mxu0 0
        %764 = vmatpush1.bf16.msra.mxu0 %v740
        %765 = vmatprep.subr.bf16.mxu0 0
        %766 = vmatpush1.bf16.msra.mxu0 0
        %767 = vmatprep.subr.bf16.mxu0 0
        %768 = vmatpush1.bf16.msra.mxu0 0
        %769 = vmatprep.subr.bf16.mxu0 0
        %770 = vmatpush1.bf16.msra.mxu0 0
        %771 = vmatprep.subr.bf16.mxu0 0
        %772 = vmatpush1.bf16.msra.mxu0 0
        %773 = vmatprep.subr.bf16.mxu0 0
        %774 = vmatpush1.bf16.msra.mxu0 0
        %775 = vmatprep.subr.bf16.mxu0 0
        %776 = vmatpush1.bf16.msra.mxu0 0
        %777 = vmatprep.subr.bf16.mxu0 0
        %778 = vmatpush1.bf16.msra.mxu0 0
        %779 = vmatprep.subr.bf16.mxu0 0
        %780 = vmatpush1.bf16.msra.mxu0 0
        %781 = vmatprep.mubr.bf16.mxu0 0
        %782 = vmatmul.mubr.bf16.gmra.mrb[0].mxu0 %v693
        %v783 = vpop.f32.mrb[0].mxu0
        %v784 = vadd.f32 %v647, %v783
        %v785 = vpop.f32.mrb[0].mxu0
        %v786 = vpop.f32.mrb[0].mxu0
        %v787 = vadd.f32 %v650, %v786
        %v788 = vpop.f32.mrb[0].mxu0
        %789 = vmatprep.mubr.bf16.mxu0 0
        %790 = vmatmul.mubr.bf16.gmra.mrb[0].mxu0 %v694
        %v791 = vpop.f32.mrb[0].mxu0
        %v792 = vadd.f32 %v655, %v791
        %v793 = vpop.f32.mrb[0].mxu0
        %v794 = vpop.f32.mrb[0].mxu0
        %v795 = vadd.f32 %v658, %v794
        %v796 = vpop.f32.mrb[0].mxu0
        %797 = vmatprep.mubr.bf16.mxu0 0
        %798 = vmatmul.mubr.bf16.gmra.mrb[0].mxu0 %v695
        %v799 = vpop.f32.mrb[0].mxu0
        %v800 = vadd.f32 %v663, %v799
        %v801 = vpop.f32.mrb[0].mxu0
        %v802 = vpop.f32.mrb[0].mxu0
        %v803 = vadd.f32 %v666, %v802
        %v804 = vpop.f32.mrb[0].mxu0
        %805 = vmatprep.mubr.bf16.mxu0 0
        %806 = vmatmul.mubr.bf16.gmra.mrb[0].mxu0 %v696
        %v807 = vpop.f32.mrb[0].mxu0
        %v808 = vadd.f32 %v671, %v807
        %v809 = vpop.f32.mrb[0].mxu0
        %v810 = vpop.f32.mrb[0].mxu0
        %v811 = vadd.f32 %v674, %v810
        %v812 = vpop.f32.mrb[0].mxu0
        %813 = vdwg.mxu0
        %v814 = vld [vmem:[%s4] sm:$0x1]
        %v816 = vlaneseq
        %v817 = vshrl.u32 %v816, 7
        %v818 = vsub.s32 0, %v817
        %v819 = vrot.slane %v814, %v818
        %v821 = vadd.f32 %v784, %v819
        %v822 = vadd.f32 %v787, %v819
        %v823 = vadd.f32 %v792, %v819
        %v824 = vadd.f32 %v795, %v819
        %v825 = vadd.f32 %v800, %v819
        %v826 = vadd.f32 %v803, %v819
        %v827 = vadd.f32 %v808, %v819
        %v828 = vadd.f32 %v811, %v819
        %v829 = vmul.f32 %v821, 0.5
        %v830 = vmul.f32 %v822, 0.5
        %v831 = vmul.f32 %v823, 0.5
        %v832 = vmul.f32 %v824, 0.5
        %v833 = vmul.f32 %v825, 0.5
        %v834 = vmul.f32 %v826, 0.5
        %v835 = vmul.f32 %v827, 0.5
        %v836 = vmul.f32 %v828, 0.5
        %v837 = vmul.f32 %v821, 0.70710677
        %v838 = vmul.f32 %v822, 0.70710677
        %v839 = vmul.f32 %v823, 0.70710677
        %v840 = vmul.f32 %v824, 0.70710677
        %v841 = vmul.f32 %v825, 0.70710677
        %v842 = vmul.f32 %v826, 0.70710677
        %v843 = vmul.f32 %v827, 0.70710677
        %v844 = vmul.f32 %v828, 0.70710677
        %v845 = verf.f32.pop %v837
        %v846 = verf.f32.pop %v838
        %v847 = verf.f32.pop %v839
        %v848 = verf.f32.pop %v840
        %v849 = verf.f32.pop %v841
        %v850 = verf.f32.pop %v842
        %v851 = verf.f32.pop %v843
        %v852 = verf.f32.pop %v844
        %v853 = vadd.f32 %v845, 1.0
        %v854 = vadd.f32 %v846, 1.0
        %v855 = vadd.f32 %v847, 1.0
        %v856 = vadd.f32 %v848, 1.0
        %v857 = vadd.f32 %v849, 1.0
        %v858 = vadd.f32 %v850, 1.0
        %v859 = vadd.f32 %v851, 1.0
        %v860 = vadd.f32 %v852, 1.0
        %v861 = vmul.f32 %v829, %v853
        %v862 = vmul.f32 %v830, %v854
        %v863 = vmul.f32 %v831, %v855
        %v864 = vmul.f32 %v832, %v856
        %v865 = vmul.f32 %v833, %v857
        %v866 = vmul.f32 %v834, %v858
        %v867 = vmul.f32 %v835, %v859
        %v868 = vmul.f32 %v836, %v860
        %v869 = vpack.c.bf16 %v862, %v861
        %v870 = vpack.c.bf16 %v864, %v863
        %v871 = vpack.c.bf16 %v866, %v865
        %v872 = vpack.c.bf16 %v868, %v867
        %v873 = vld [vmem:[#allocation10] sm:$0xf]
        %v874 = vld [vmem:[#allocation10 + $0x4] sm:$0xf]
        %v875 = vld [vmem:[#allocation10 + $0x8] sm:$0xf]
        %v876 = vld [vmem:[#allocation10 + $0xc] sm:$0xf]
        %v877 = vld [vmem:[#allocation10 + $0x10] sm:$0xf]
        %v878 = vld [vmem:[#allocation10 + $0x14] sm:$0xf]
        %v879 = vld [vmem:[#allocation10 + $0x18] sm:$0xf]
        %v880 = vld [vmem:[#allocation10 + $0x1c] sm:$0xf]
        %v881 = vld [vmem:[#allocation10 + $0x20] sm:$0xf]
        %v882 = vld [vmem:[#allocation10 + $0x24] sm:$0xf]
        %v883 = vld [vmem:[#allocation10 + $0x28] sm:$0xf]
        %v884 = vld [vmem:[#allocation10 + $0x2c] sm:$0xf]
        %v885 = vld [vmem:[#allocation10 + $0x30] sm:$0xf]
        %v886 = vld [vmem:[#allocation10 + $0x34] sm:$0xf]
        %v887 = vld [vmem:[#allocation10 + $0x38] sm:$0xf]
        %v888 = vld [vmem:[#allocation10 + $0x3c] sm:$0xf]
        %v889 = vld [vmem:[%s7] sm:$0x1]
        %v891 = vlaneseq
        %v892 = vshrl.u32 %v891, 7
        %v893 = vsub.s32 0, %v892
        %v894 = vrot.slane %v889, %v893
        %v912 = vunpack.c.l.b16 %v873
        %v913 = vunpack.c.l.b16 %v874
        %v914 = vunpack.c.l.b16 %v875
        %v915 = vunpack.c.l.b16 %v876
        %v916 = vunpack.c.l.b16 %v877
        %v917 = vunpack.c.l.b16 %v878
        %v918 = vunpack.c.l.b16 %v879
        %v919 = vunpack.c.l.b16 %v880
        %v920 = vunpack.c.l.b16 %v881
        %v921 = vunpack.c.l.b16 %v882
        %v922 = vunpack.c.l.b16 %v883
        %v923 = vunpack.c.l.b16 %v884
        %v924 = vunpack.c.l.b16 %v885
        %v925 = vunpack.c.l.b16 %v886
        %v926 = vunpack.c.l.b16 %v887
        %v927 = vunpack.c.l.b16 %v888
        %v928 = vpack.c.b16 %v913, %v912
        %v929 = vpack.c.b16 %v915, %v914
        %v930 = vpack.c.b16 %v917, %v916
        %v931 = vpack.c.b16 %v919, %v918
        %v932 = vpack.c.b16 %v921, %v920
        %v933 = vpack.c.b16 %v923, %v922
        %v934 = vpack.c.b16 %v925, %v924
        %v935 = vpack.c.b16 %v927, %v926
        %944 = vmatprep.subr.bf16.mxu0 0
        %945 = vmatpush1.bf16.msra.mxu0 %v928
        %946 = vmatprep.subr.bf16.mxu0 0
        %947 = vmatpush1.bf16.msra.mxu0 %v929
        %948 = vmatprep.subr.bf16.mxu0 0
        %949 = vmatpush1.bf16.msra.mxu0 %v930
        %950 = vmatprep.subr.bf16.mxu0 0
        %951 = vmatpush1.bf16.msra.mxu0 %v931
        %952 = vmatprep.subr.bf16.mxu0 0
        %953 = vmatpush1.bf16.msra.mxu0 %v932
        %954 = vmatprep.subr.bf16.mxu0 0
        %955 = vmatpush1.bf16.msra.mxu0 %v933
        %956 = vmatprep.subr.bf16.mxu0 0
        %957 = vmatpush1.bf16.msra.mxu0 %v934
        %958 = vmatprep.subr.bf16.mxu0 0
        %959 = vmatpush1.bf16.msra.mxu0 %v935
        %960 = vmatprep.subr.bf16.mxu0 0
        %961 = vmatpush1.bf16.msra.mxu0 0
        %962 = vmatprep.subr.bf16.mxu0 0
        %963 = vmatpush1.bf16.msra.mxu0 0
        %964 = vmatprep.subr.bf16.mxu0 0
        %965 = vmatpush1.bf16.msra.mxu0 0
        %966 = vmatprep.subr.bf16.mxu0 0
        %967 = vmatpush1.bf16.msra.mxu0 0
        %968 = vmatprep.subr.bf16.mxu0 0
        %969 = vmatpush1.bf16.msra.mxu0 0
        %970 = vmatprep.subr.bf16.mxu0 0
        %971 = vmatpush1.bf16.msra.mxu0 0
        %972 = vmatprep.subr.bf16.mxu0 0
        %973 = vmatpush1.bf16.msra.mxu0 0
        %974 = vmatprep.subr.bf16.mxu0 0
        %975 = vmatpush1.bf16.msra.mxu0 0
        %976 = vmatprep.mubr.bf16.mxu0 0
        %977 = vmatmul.mubr.bf16.gmra.mrb[0].mxu0 %v869
        %v978 = vpop.f32.mrb[0].mxu0
        %v979 = vadd.f32 %v894, %v978
        %v980 = vpop.f32.mrb[0].mxu0
        %v981 = vpop.f32.mrb[0].mxu0
        %v982 = vadd.f32 %v894, %v981
        %v983 = vpop.f32.mrb[0].mxu0
        %984 = vmatprep.mubr.bf16.mxu0 0
        %985 = vmatmul.mubr.bf16.gmra.mrb[0].mxu0 %v870
        %v986 = vpop.f32.mrb[0].mxu0
        %v987 = vadd.f32 %v894, %v986
        %v988 = vpop.f32.mrb[0].mxu0
        %v989 = vpop.f32.mrb[0].mxu0
        %v990 = vadd.f32 %v894, %v989
        %v991 = vpop.f32.mrb[0].mxu0
        %992 = vmatprep.mubr.bf16.mxu0 0
        %993 = vmatmul.mubr.bf16.gmra.mrb[0].mxu0 %v871
        %v994 = vpop.f32.mrb[0].mxu0
        %v995 = vadd.f32 %v894, %v994
        %v996 = vpop.f32.mrb[0].mxu0
        %v997 = vpop.f32.mrb[0].mxu0
        %v998 = vadd.f32 %v894, %v997
        %v999 = vpop.f32.mrb[0].mxu0
        %1000 = vmatprep.mubr.bf16.mxu0 0
        %1001 = vmatmul.mubr.bf16.gmra.mrb[0].mxu0 %v872
        %v1002 = vpop.f32.mrb[0].mxu0
        %v1003 = vadd.f32 %v894, %v1002
        %v1004 = vpop.f32.mrb[0].mxu0
        %v1005 = vpop.f32.mrb[0].mxu0
        %v1006 = vadd.f32 %v894, %v1005
        %v1007 = vpop.f32.mrb[0].mxu0
        %1008 = vdwg.mxu0
        %1009 = vst [vmem:[%s479] sm:$0xff] %v979
        %1010 = vst [vmem:[%s479 + $0x8] sm:$0xff] %v982
        %1011 = vst [vmem:[%s479 + $0x10] sm:$0xff] %v987
        %1012 = vst [vmem:[%s479 + $0x18] sm:$0xff] %v990
        %1013 = vst [vmem:[%s479 + $0x20] sm:$0xff] %v995
        %1014 = vst [vmem:[%s479 + $0x28] sm:$0xff] %v998
        %1015 = vst [vmem:[%s479 + $0x30] sm:$0xff] %v1003
        %1016 = vst [vmem:[%s479 + $0x38] sm:$0xff] %v1006
        %v1017 = vld [vmem:[#allocation11] sm:$0xf]
        %v1018 = vld [vmem:[#allocation11 + $0x4] sm:$0xf]
        %v1019 = vld [vmem:[#allocation11 + $0x8] sm:$0xf]
        %v1020 = vld [vmem:[#allocation11 + $0xc] sm:$0xf]
        %v1021 = vld [vmem:[#allocation11 + $0x10] sm:$0xf]
        %v1022 = vld [vmem:[#allocation11 + $0x14] sm:$0xf]
        %v1023 = vld [vmem:[#allocation11 + $0x18] sm:$0xf]
        %v1024 = vld [vmem:[#allocation11 + $0x1c] sm:$0xf]
        %v1025 = vld [vmem:[#allocation11 + $0x20] sm:$0xf]
        %v1026 = vld [vmem:[#allocation11 + $0x24] sm:$0xf]
        %v1027 = vld [vmem:[#allocation11 + $0x28] sm:$0xf]
        %v1028 = vld [vmem:[#allocation11 + $0x2c] sm:$0xf]
        %v1029 = vld [vmem:[#allocation11 + $0x30] sm:$0xf]
        %v1030 = vld [vmem:[#allocation11 + $0x34] sm:$0xf]
        %v1031 = vld [vmem:[#allocation11 + $0x38] sm:$0xf]
        %v1032 = vld [vmem:[#allocation11 + $0x3c] sm:$0xf]
        %v1033 = vld [vmem:[%s8] sm:$0x1]
        %v1035 = vlaneseq
        %v1036 = vshrl.u32 %v1035, 7
        %v1037 = vsub.s32 0, %v1036
        %v1038 = vrot.slane %v1033, %v1037
        %v1056 = vunpack.c.l.b16 %v1017
        %v1057 = vunpack.c.l.b16 %v1018
        %v1058 = vunpack.c.l.b16 %v1019
        %v1059 = vunpack.c.l.b16 %v1020
        %v1060 = vunpack.c.l.b16 %v1021
        %v1061 = vunpack.c.l.b16 %v1022
        %v1062 = vunpack.c.l.b16 %v1023
        %v1063 = vunpack.c.l.b16 %v1024
        %v1064 = vunpack.c.l.b16 %v1025
        %v1065 = vunpack.c.l.b16 %v1026
        %v1066 = vunpack.c.l.b16 %v1027
        %v1067 = vunpack.c.l.b16 %v1028
        %v1068 = vunpack.c.l.b16 %v1029
        %v1069 = vunpack.c.l.b16 %v1030
        %v1070 = vunpack.c.l.b16 %v1031
        %v1071 = vunpack.c.l.b16 %v1032
        %v1072 = vpack.c.b16 %v1057, %v1056
        %v1073 = vpack.c.b16 %v1059, %v1058
        %v1074 = vpack.c.b16 %v1061, %v1060
        %v1075 = vpack.c.b16 %v1063, %v1062
        %v1076 = vpack.c.b16 %v1065, %v1064
        %v1077 = vpack.c.b16 %v1067, %v1066
        %v1078 = vpack.c.b16 %v1069, %v1068
        %v1079 = vpack.c.b16 %v1071, %v1070
        %1088 = vmatprep.subr.bf16.mxu0 0
        %1089 = vmatpush1.bf16.msra.mxu0 %v1072
        %1090 = vmatprep.subr.bf16.mxu0 0
        %1091 = vmatpush1.bf16.msra.mxu0 %v1073
        %1092 = vmatprep.subr.bf16.mxu0 0
        %1093 = vmatpush1.bf16.msra.mxu0 %v1074
        %1094 = vmatprep.subr.bf16.mxu0 0
        %1095 = vmatpush1.bf16.msra.mxu0 %v1075
        %1096 = vmatprep.subr.bf16.mxu0 0
        %1097 = vmatpush1.bf16.msra.mxu0 %v1076
        %1098 = vmatprep.subr.bf16.mxu0 0
        %1099 = vmatpush1.bf16.msra.mxu0 %v1077
        %1100 = vmatprep.subr.bf16.mxu0 0
        %1101 = vmatpush1.bf16.msra.mxu0 %v1078
        %1102 = vmatprep.subr.bf16.mxu0 0
        %1103 = vmatpush1.bf16.msra.mxu0 %v1079
        %1104 = vmatprep.subr.bf16.mxu0 0
        %1105 = vmatpush1.bf16.msra.mxu0 0
        %1106 = vmatprep.subr.bf16.mxu0 0
        %1107 = vmatpush1.bf16.msra.mxu0 0
        %1108 = vmatprep.subr.bf16.mxu0 0
        %1109 = vmatpush1.bf16.msra.mxu0 0
        %1110 = vmatprep.subr.bf16.mxu0 0
        %1111 = vmatpush1.bf16.msra.mxu0 0
        %1112 = vmatprep.subr.bf16.mxu0 0
        %1113 = vmatpush1.bf16.msra.mxu0 0
        %1114 = vmatprep.subr.bf16.mxu0 0
        %1115 = vmatpush1.bf16.msra.mxu0 0
        %1116 = vmatprep.subr.bf16.mxu0 0
        %1117 = vmatpush1.bf16.msra.mxu0 0
        %1118 = vmatprep.subr.bf16.mxu0 0
        %1119 = vmatpush1.bf16.msra.mxu0 0
        %1120 = vmatprep.mubr.bf16.mxu0 0
        %1121 = vmatmul.mubr.bf16.gmra.mrb[0].mxu0 %v869
        %v1122 = vpop.f32.mrb[0].mxu0
        %v1123 = vadd.f32 %v1038, %v1122
        %v1124 = vpop.f32.mrb[0].mxu0
        %v1125 = vpop.f32.mrb[0].mxu0
        %v1126 = vadd.f32 %v1038, %v1125
        %v1127 = vpop.f32.mrb[0].mxu0
        %1128 = vmatprep.mubr.bf16.mxu0 0
        %1129 = vmatmul.mubr.bf16.gmra.mrb[0].mxu0 %v870
        %v1130 = vpop.f32.mrb[0].mxu0
        %v1131 = vadd.f32 %v1038, %v1130
        %v1132 = vpop.f32.mrb[0].mxu0
        %v1133 = vpop.f32.mrb[0].mxu0
        %v1134 = vadd.f32 %v1038, %v1133
        %v1135 = vpop.f32.mrb[0].mxu0
        %1136 = vmatprep.mubr.bf16.mxu0 0
        %1137 = vmatmul.mubr.bf16.gmra.mrb[0].mxu0 %v871
        %v1138 = vpop.f32.mrb[0].mxu0
        %v1139 = vadd.f32 %v1038, %v1138
        %v1140 = vpop.f32.mrb[0].mxu0
        %v1141 = vpop.f32.mrb[0].mxu0
        %v1142 = vadd.f32 %v1038, %v1141
        %v1143 = vpop.f32.mrb[0].mxu0
        %1144 = vmatprep.mubr.bf16.mxu0 0
        %1145 = vmatmul.mubr.bf16.gmra.mrb[0].mxu0 %v872
        %v1146 = vpop.f32.mrb[0].mxu0
        %v1147 = vadd.f32 %v1038, %v1146
        %v1148 = vpop.f32.mrb[0].mxu0
        %v1149 = vpop.f32.mrb[0].mxu0
        %v1150 = vadd.f32 %v1038, %v1149
        %v1151 = vpop.f32.mrb[0].mxu0
        %1152 = vdwg.mxu0
        %1153 = vst [vmem:[%s486] sm:$0xff] %v1123
        %1154 = vst [vmem:[%s486 + $0x8] sm:$0xff] %v1126
        %1155 = vst [vmem:[%s486 + $0x10] sm:$0xff] %v1131
        %1156 = vst [vmem:[%s486 + $0x18] sm:$0xff] %v1134
        %1157 = vst [vmem:[%s486 + $0x20] sm:$0xff] %v1139
        %1158 = vst [vmem:[%s486 + $0x28] sm:$0xff] %v1142
        %1159 = vst [vmem:[%s486 + $0x30] sm:$0xff] %v1147
        %1160 = vst [vmem:[%s486 + $0x38] sm:$0xff] %v1150
        %s1161 = sand.u32 %s243, 1
        %s1162 = scalar_lea.sflag [#allocation4], %s1161
        %s1163 = sand.u32 %s243, 1
        %s1164 = smul.addr %s1163, 64
        %s1165 = scalar_lea.vmem [#allocation13], %s1164
        %s1166 = sand.u32 %s269, 1
        %s1167 = scalar_lea.sflag [#allocation15], %s1166
        %s1168 = sand.u32 %s269, 1
        %s1169 = smul.addr %s1168, 64
        %s1170 = scalar_lea.vmem [#allocation14], %s1169
        // Predicated region
        $region81: #{tpu_custom_call.1} parent=55 // pred_check
          %p1171 = pneg %p253
        $region82: #{tpu_custom_call.1} parent=55 // pred_check_branch
          %1173 = sbr.rel (%p1171) target = $region84
        $region83: #{tpu_custom_call.1} parent=55 // pred_region
          %s1174 = smul.u32 8, %s36
          %s1176 = ssub.s32 1024, 1024
          %1177 = vsyncadd %s1162, %s1176
          %s1178 = smul.addr %s1174, 128
          %s1179 = scalar_lea.hbm %s9, %s1178
          %s1180 = sshll.u32 %s1165, 4
          %s1181 = int_to_ptr.vmem [resolvable:$true] %s1180
          %1186 = dma.vmem_to_hbm [thread:$0]  %s1181, 1024, %s1179, %s1162, 128, 128, 8
        $region84: #{tpu_custom_call.1} parent=55 // pred_fallthru
          _
        // Predicated region
        $region85: #{tpu_custom_call.1} parent=55 // pred_check
          %p1187 = pneg %p279
        $region86: #{tpu_custom_call.1} parent=55 // pred_check_branch
          %1189 = sbr.rel (%p1187) target = $region88
        $region87: #{tpu_custom_call.1} parent=55 // pred_region
          %s1190 = smul.u32 8, %s36
          %s1192 = ssub.s32 1024, 1024
          %1193 = vsyncadd %s1167, %s1192
          %s1194 = smul.addr %s1190, 128
          %s1195 = scalar_lea.hbm %s10, %s1194
          %s1196 = sshll.u32 %s1170, 4
          %s1197 = int_to_ptr.vmem [resolvable:$true] %s1196
          %1202 = dma.vmem_to_hbm [thread:$0]  %s1197, 1024, %s1195, %s1167, 128, 128, 8
        $region88: #{tpu_custom_call.1} parent=55 // pred_fallthru
          _
      $region56: #{tpu_custom_call.1} parent=5 // pred_fallthru
        _
      %p1203 = scmp.le.s32.totalorder 2, %s31
      // Predicated region
      $region89: #{tpu_custom_call.1} parent=5 // pred_check
        %p1204 = pneg %p1203
      $region90: #{tpu_custom_call.1} parent=5 // pred_check_branch
        %1206 = sbr.rel (%p1204) target = $region92
      $region91: #{tpu_custom_call.1} parent=5 // pred_region
        %s1207 = ssub.s32 %s31, 2
        // Predicated region
        $region93: #{tpu_custom_call.1} parent=91 // pred_check
          %p1208 = pneg %p259
        $region94: #{tpu_custom_call.1} parent=91 // pred_check_branch
          %1210 = sbr.rel (%p1208) target = $region96
        $region95: #{tpu_custom_call.1} parent=91 // pred_region
          %s1211 = sand.u32 %s244, 1
          %s1212 = scalar_lea.sflag [#allocation4], %s1211
          %s1213 = sand.u32 %s244, 1
          %s1214 = smul.addr %s1213, 64
          %s1215 = scalar_lea.vmem [#allocation13], %s1214
          %1216 = dma.done %s1212, 1024
        $region96: #{tpu_custom_call.1} parent=91 // pred_fallthru
          _
        // Predicated region
        $region97: #{tpu_custom_call.1} parent=91 // pred_check
          %p1217 = pneg %p285
        $region98: #{tpu_custom_call.1} parent=91 // pred_check_branch
          %1219 = sbr.rel (%p1217) target = $region100
        $region99: #{tpu_custom_call.1} parent=91 // pred_region
          %s1220 = sand.u32 %s270, 1
          %s1221 = scalar_lea.sflag [#allocation15], %s1220
          %s1222 = sand.u32 %s270, 1
          %s1223 = smul.addr %s1222, 64
          %s1224 = scalar_lea.vmem [#allocation14], %s1223
          %1225 = dma.done %s1221, 1024
        $region100: #{tpu_custom_call.1} parent=91 // pred_fallthru
          _
      $region92: #{tpu_custom_call.1} parent=5 // pred_fallthru
        _
    $region6: #{tpu_custom_call.1} parent=1 // loop_footer
      %s35 = sadd.s32 1, %s31
    $region7: #{tpu_custom_call.1} parent=1 // loop_footer_branch
      %30 = sbr.rel target = $region3
    $region8: #{tpu_custom_call.1} parent=1 // loop_exit
      _
    %1226 = vsyncpa [#allocation3], 1
    %s1227 = scalar_lea.sflag [#allocation3], 1
    %1228 = vsyncpa %s1227, 1
    %1229 = vsyncpa [#allocation6], 1
    %s1230 = scalar_lea.sflag [#allocation6], 1
    %1231 = vsyncpa %s1230, 1
    %1232 = vsyncpa [#allocation9], 1
    %1233 = vsyncpa [#allocation12], 1
    %1234 = vsyncpa [#allocation4], 1
    %s1235 = scalar_lea.sflag [#allocation4], 1
    %1236 = vsyncpa %s1235, 1
    %1237 = vsyncpa [#allocation15], 1
    %s1238 = scalar_lea.sflag [#allocation15], 1
    %1239 = vsyncpa %s1238, 1

</llo_original>
